<compile_context>
chip_gen: v7x
topology: tpu7x:2x2x1
jax: 0.10.0
libtpu: 0.0.40
codegen_flags: <defaults>
</compile_context>

<pallas_src>
import numpy as np
import jax
import jax.numpy as jnp
from jax import lax
from jax.experimental import pallas as pl
from jax.experimental.pallas import tpu as pltpu

INV_SQRT2 = float(1.0 / np.sqrt(2.0))
NEG_SLOPE = 0.2  # LeakyReLU slope used in projected-GAN discriminator blocks


def _halo_window_copies(x_hbm, xwin, sem, n, t, slot, TH, H):
    """3 DMA descriptors bringing image rows [t*TH-1, t*TH+TH] (clamped) into xwin[slot]."""
    r0 = t * TH                          # first output row of tile t
    top = jnp.maximum(r0 - 1, 0)         # clamped halo source rows
    bot = jnp.minimum(r0 + TH, H - 1)    # (out-of-image halos are zeroed later)
    return (
        pltpu.make_async_copy(x_hbm.at[n, pl.ds(r0, TH)],
                              xwin.at[slot, pl.ds(1, TH)], sem.at[slot, 0]),
        pltpu.make_async_copy(x_hbm.at[n, pl.ds(top, 1)],
                              xwin.at[slot, pl.ds(0, 1)], sem.at[slot, 1]),
        pltpu.make_async_copy(x_hbm.at[n, pl.ds(bot, 1)],
                              xwin.at[slot, pl.ds(TH + 1, 1)], sem.at[slot, 2]),
    )


def _resblock_kernel(x_hbm, w_ref, b_ref, o_ref, xwin, col, sem):
    # x_hbm : (N, H, W, Cp)      bf16, stays in HBM (manual halo-window DMA)
    # w_ref : (3, 3*Cp, Cp)      bf16, VMEM-resident weight, one (3Cp,Cp) slab per ky
    # b_ref : (1, Cp)            f32,  VMEM-resident bias
    # o_ref : (1, TH, W, Cp)     f32,  output block (auto-pipelined)
    # xwin  : (2, TH+2, W, Cp)   bf16 scratch — double-buffered halo'd row windows
    # col   : (TH+2, W, 3*Cp)    bf16 scratch — kx-only im2col slab
    # sem   : (2, 3)             DMA semaphores (one triple per buffer slot)
    n = pl.program_id(0)
    s = pl.program_id(1)
    tt = pl.program_id(2)
    ntt = pl.num_programs(2)
    nt = pl.num_programs(1) * ntt        # total row tiles per image
    t = s * ntt + tt                     # global row-tile index

    H = x_hbm.shape[1]
    _, THp2, W, Cp = xwin.shape
    TH = THp2 - 2
    slot = tt % 2

    # First tile of this (image, segment): no prefetch exists yet -> fetch now.
    @pl.when(tt == 0)
    def _():
        for cp in _halo_window_copies(x_hbm, xwin, sem, n, t, slot, TH, H):
            cp.start()

    # Wait for this tile's window (started above if tt==0, else prefetched at tt-1).
    for cp in _halo_window_copies(x_hbm, xwin, sem, n, t, slot, TH, H):
        cp.wait()

    # Prefetch the next row-window of the same segment into the other slot while
    # this tile is being computed (hides the manual input DMA behind the MXU work).
    @pl.when(tt + 1 < ntt)
    def _():
        for cp in _halo_window_copies(x_hbm, xwin, sem, n, t + 1, 1 - slot, TH, H):
            cp.start()

    xw = xwin[slot]                                   # (TH+2, W, Cp) bf16 value

    # kx-only im2col: col[i, x, kx*Cp + c] = x_pad[r0 - 1 + i, x + kx - 1, c]
    # Row (ky) shifts stay as free slices of col; only the +-1 column shifts need
    # sublane-offset stores.  Channel slices are 128-aligned -> lane-dense stores.
    col[:, :, Cp:2 * Cp] = xw                                   # kx = 1 (center)
    col[:, 0:1, 0:Cp] = jnp.zeros((THp2, 1, Cp), col.dtype)     # kx = 0 (left)
    col[:, 1:, 0:Cp] = xw[:, :W - 1, :]
    col[:, :W - 1, 2 * Cp:3 * Cp] = xw[:, 1:, :]                # kx = 2 (right)
    col[:, W - 1:W, 2 * Cp:3 * Cp] = jnp.zeros((THp2, 1, Cp), col.dtype)

    # Zero the halo rows that fall outside the image ("SAME" zero padding).
    @pl.when(t == 0)
    def _():
        col[0:1] = jnp.zeros((1, W, 3 * Cp), col.dtype)

    @pl.when(t == nt - 1)
    def _():
        col[THp2 - 1:THp2] = jnp.zeros((1, W, 3 * Cp), col.dtype)

    # ---- 3 MXU matmuls (one per ky), K = 3*Cp, f32 accumulation --------------
    acc = jnp.dot(col[0:TH].reshape(TH * W, 3 * Cp), w_ref[0],
                  preferred_element_type=jnp.float32)
    acc = acc + jnp.dot(col[1:TH + 1].reshape(TH * W, 3 * Cp), w_ref[1],
                        preferred_element_type=jnp.float32)
    acc = acc + jnp.dot(col[2:TH + 2].reshape(TH * W, 3 * Cp), w_ref[2],
                        preferred_element_type=jnp.float32)

    # ---- f32 epilogue: bias + LeakyReLU(0.2) + residual + 1/sqrt(2) ----------
    acc = acc + b_ref[...]
    y = jnp.where(acc > 0, acc, NEG_SLOPE * acc)
    resid = xw[1:TH + 1].astype(jnp.float32).reshape(TH * W, Cp)
    out = (y + resid) * INV_SQRT2
    o_ref[...] = out.reshape(1, TH, W, Cp).astype(o_ref.dtype)


def _round_up(x, m):
    return (x + m - 1) // m * m


def _pick_tile_h(H, W, Cp, budget_bytes=12 * 1024 * 1024):
    # per-output-row VMEM cost: 2x bf16 halo windows + bf16 kx-im2col slab
    # + double-buffered f32 output block + f32 accumulator / live-value headroom
    per_row = W * Cp * (2 * 2 + 3 * 2 + 2 * 4 + 4 + 2)
    th_max = max(1, min(H, budget_bytes // max(per_row, 1)))
    for cand in range(th_max, 0, -1):
        if H % cand == 0:
            return cand
    return 1


def residual_block(x_nchw, w_hwio, bias, *, tile_h=None):
    """(fn(x) + x) / sqrt(2) with fn = Conv2d(C,C,3,pad=1) + LeakyReLU(0.2).

    x_nchw : (N, C, H, W) float32
    w_hwio : (3, 3, C, C) float32
    bias   : (C,)         float32
    returns (N, C, H, W) float32
    """
    N, C, H, W = x_nchw.shape
    Cp = _round_up(C, 128)                       # lane-dense channel axis
    TH = _pick_tile_h(H, W, Cp) if tile_h is None else int(tile_h)
    if H % TH != 0:
        raise ValueError(f"tile_h={TH} must divide H={H}")
    nt = H // TH
    # Megacore: batch is the primary parallel axis; for a single image, split the
    # row tiles into two parallel segments instead so both TensorCores get work
    # (each segment keeps its own sequential prefetch chain).
    S = 2 if (N == 1 and nt >= 2 and nt % 2 == 0) else 1
    ntt = nt // S

    # wrapper glue: NCHW -> NHWC, channel zero-pad, bf16 cast for MXU inputs.
    x_nhwc = jnp.transpose(x_nchw, (0, 2, 3, 1))
    if Cp != C:
        x_nhwc = jnp.pad(x_nhwc, ((0, 0), (0, 0), (0, 0), (0, Cp - C)))
        w_hwio = jnp.pad(w_hwio, ((0, 0), (0, 0), (0, Cp - C), (0, Cp - C)))
        bias = jnp.pad(bias, (0, Cp - C))
    x_in = x_nhwc.astype(jnp.bfloat16)
    # (ky, kx, cin, cout) -> (ky, kx*Cp + cin, cout): one (3*Cp, Cp) slab per ky.
    w3 = w_hwio.reshape(3, 3 * Cp, Cp).astype(jnp.bfloat16)
    b2d = bias.reshape(1, Cp).astype(jnp.float32)

    # rough VMEM need -> explicit scoped limit (v5e's default is only 16 MiB).
    est = (2 * (TH + 2) * W * Cp * 2        # double-buffered halo windows (bf16)
           + (TH + 2) * W * 3 * Cp * 2      # kx im2col slab (bf16)
           + 2 * TH * W * Cp * 4            # double-buffered output block (f32)
           + 2 * TH * W * Cp * 4            # f32 accumulator / live-value headroom
           + 2 * 9 * Cp * Cp * 2 + 2 * Cp * 4)
    vmem_limit = int(min(max(2 * est, 32 * 1024 * 1024), 64 * 1024 * 1024))

    out_p = pl.pallas_call(
        _resblock_kernel,
        out_shape=jax.ShapeDtypeStruct((N, H, W, Cp), jnp.float32),
        grid_spec=pltpu.PrefetchScalarGridSpec(
            num_scalar_prefetch=0,
            grid=(N, S, ntt),
            in_specs=[
                pl.BlockSpec(memory_space=pl.ANY),                          # x in HBM
                pl.BlockSpec((3, 3 * Cp, Cp), lambda n, s, t: (0, 0, 0)),   # weight
                pl.BlockSpec((1, Cp), lambda n, s, t: (0, 0)),              # bias
            ],
            out_specs=pl.BlockSpec((1, TH, W, Cp),
                                   lambda n, s, t: (n, s * ntt + t, 0, 0)),
            scratch_shapes=[
                pltpu.VMEM((2, TH + 2, W, Cp), jnp.bfloat16),   # halo'd input windows
                pltpu.VMEM((TH + 2, W, 3 * Cp), jnp.bfloat16),  # kx im2col slab
                pltpu.SemaphoreType.DMA((2, 3)),
            ],
        ),
        compiler_params=pltpu.CompilerParams(
            dimension_semantics=("parallel", "parallel", "arbitrary"),
            vmem_limit_bytes=vmem_limit,
        ),
    )(x_in, w3, b2d)

    out = out_p[..., :C].astype(x_nchw.dtype)
    return jnp.transpose(out, (0, 3, 1, 2))                  # back to NCHW


def _reference(x_nchw, w_hwio, bias):
    """Pure-JAX reference for correctness checking."""
    y = lax.conv_general_dilated(
        x_nchw, w_hwio,
        window_strides=(1, 1), padding="SAME",
        dimension_numbers=("NCHW", "HWIO", "NCHW"),
        precision=lax.Precision.HIGHEST)
    y = y + bias.reshape(1, -1, 1, 1)
    y = jnp.where(y > 0, y, NEG_SLOPE * y)
    return (y + x_nchw) * INV_SQRT2


if __name__ == "__main__":
    key = jax.random.PRNGKey(0)
    kx, kw, kb = jax.random.split(key, 3)

    N, C, H, W = 2, 4, 16, 16
    x = jax.random.normal(kx, (N, C, H, W), dtype=jnp.float32)
    w = jax.random.normal(kw, (3, 3, C, C), dtype=jnp.float32) * 0.1
    b = jax.random.normal(kb, (C,), dtype=jnp.float32) * 0.1

    # Reference with matched bf16 rounding of the matmul inputs (the kernel uses
    # bf16 MXU inputs with f32 accumulation and a pure-f32 epilogue).
    xb = x.astype(jnp.bfloat16).astype(jnp.float32)
    wb = w.astype(jnp.bfloat16).astype(jnp.float32)
    ref = _reference(xb, wb, b)

    # multi-tile path (halo DMA + cross-tile prefetch) and single-tile path
    out_tiled = jax.block_until_ready(residual_block(x, w, b, tile_h=8))
    out_whole = jax.block_until_ready(residual_block(x, w, b))
    assert out_tiled.shape == (N, C, H, W)
    np.testing.assert_allclose(np.asarray(out_tiled), np.asarray(ref),
                               rtol=2e-3, atol=2e-3)
    np.testing.assert_allclose(np.asarray(out_whole), np.asarray(ref),
                               rtol=2e-3, atol=2e-3)

    # N == 1: row tiles split into two parallel segments (megacore path)
    out_single = jax.block_until_ready(residual_block(x[:1], w, b, tile_h=4))
    np.testing.assert_allclose(np.asarray(out_single), np.asarray(ref[:1]),
                               rtol=2e-3, atol=2e-3)

    print("KERNEL_OK")
</pallas_src>

<mosaic_0001>
module attributes {stable_mosaic.version = 11 : i64} {
  func.func @_resblock_kernel(%arg0: i32, %arg1: i32, %arg2: i32, %arg3: memref<2x16x16x128xbf16, #tpu.memory_space<any>>, %arg4: memref<3x384x128xbf16, #tpu.memory_space<vmem>>, %arg5: memref<1x128xf32, #tpu.memory_space<vmem>>, %arg6: memref<1x8x16x128xf32, #tpu.memory_space<vmem>>, %arg7: memref<2x10x16x128xbf16, #tpu.memory_space<vmem>>, %arg8: memref<10x16x384xbf16, #tpu.memory_space<vmem>>, %arg9: memref<2x3x!tpu.dma_semaphore, #tpu.memory_space<semaphore_mem>>) attributes {dimension_semantics = [#tpu.dimension_semantics<parallel>, #tpu.dimension_semantics<parallel>, #tpu.dimension_semantics<arbitrary>], iteration_bounds = array<i64: 2, 1, 2>, scalar_prefetch = 0 : i64, scratch_operands = 3 : i64, tpu.core_type = #tpu.core_type<tc>, window_params = [{}, {pipeline_mode = #tpu.pipeline_mode<synchronous>, transform_indices = @transform_1, window_bounds = array<i64: 3, 384, 128>}, {pipeline_mode = #tpu.pipeline_mode<synchronous>, transform_indices = @transform_2, window_bounds = array<i64: 1, 128>}, {transform_indices = @transform_3, window_bounds = array<i64: 1, 8, 16, 128>}]} {
    %c2_i32 = arith.constant 2 : i32
    %0 = arith.muli %arg1, %c2_i32 : i32
    %1 = arith.addi %0, %arg2 : i32
    %c2_i32_0 = arith.constant 2 : i32
    %c0_i32 = arith.constant 0 : i32
    %2 = arith.cmpi eq, %c2_i32_0, %c0_i32 : i32
    %c1_i32 = arith.constant 1 : i32
    %3 = arith.select %2, %c1_i32, %c2_i32_0 : i32
    %4 = arith.remsi %arg2, %3 : i32
    %c0_i32_1 = arith.constant 0 : i32
    %5 = arith.cmpi ne, %4, %c0_i32_1 : i32
    %c0_i32_2 = arith.constant 0 : i32
    %6 = arith.cmpi slt, %4, %c0_i32_2 : i32
    %c0_i32_3 = arith.constant 0 : i32
    %7 = arith.cmpi slt, %3, %c0_i32_3 : i32
    %8 = arith.xori %6, %7 : i1
    %9 = arith.andi %8, %5 : i1
    %10 = arith.addi %4, %3 : i32
    %11 = arith.select %9, %10, %4 : i32
    %c0_i32_4 = arith.constant 0 : i32
    %12 = arith.cmpi eq, %arg2, %c0_i32_4 : i32
    %13 = arith.extui %12 : i1 to i32
    %c0_i32_5 = arith.constant 0 : i32
    %14 = arith.cmpi ne, %13, %c0_i32_5 : i32
    scf.if %14 {
      %c8_i32_76 = arith.constant 8 : i32
      %93 = arith.muli %1, %c8_i32_76 : i32
      %c1_i32_77 = arith.constant 1 : i32
      %94 = arith.subi %93, %c1_i32_77 : i32
      %c0_i32_78 = arith.constant 0 : i32
      %95 = arith.maxsi %94, %c0_i32_78 : i32
      %c8_i32_79 = arith.constant 8 : i32
      %96 = arith.addi %93, %c8_i32_79 : i32
      %c15_i32_80 = arith.constant 15 : i32
      %97 = arith.minsi %96, %c15_i32_80 : i32
      %c0_i32_81 = arith.constant 0 : i32
      %c0_i32_82 = arith.constant 0 : i32
      %c0_i32_83 = arith.constant 0 : i32
      %98 = tpu.memref_slice %arg3[%arg0, %93, %c0_i32_82, %c0_i32_83] : memref<2x16x16x128xbf16, #tpu.memory_space<any>> -> memref<1x8x16x128xbf16, #tpu.memory_space<any>>
      %99 = tpu.memref_squeeze %98 : memref<1x8x16x128xbf16, #tpu.memory_space<any>> -> memref<8x16x128xbf16, #tpu.memory_space<any>>
      %c1_i32_84 = arith.constant 1 : i32
      %c0_i32_85 = arith.constant 0 : i32
      %c0_i32_86 = arith.constant 0 : i32
      %100 = tpu.memref_slice %arg7[%11, %c1_i32_84, %c0_i32_85, %c0_i32_86] : memref<2x10x16x128xbf16, #tpu.memory_space<vmem>> -> memref<1x8x16x128xbf16, #tpu.memory_space<vmem>>
      %101 = tpu.memref_squeeze %100 : memref<1x8x16x128xbf16, #tpu.memory_space<vmem>> -> memref<8x16x128xbf16, #tpu.memory_space<vmem>>
      %102 = tpu.memref_slice %arg9[%11, %c0_i32_81] : memref<2x3x!tpu.dma_semaphore, #tpu.memory_space<semaphore_mem>> -> memref<1x1x!tpu.dma_semaphore, #tpu.memory_space<semaphore_mem>>
      %103 = tpu.memref_squeeze %102 : memref<1x1x!tpu.dma_semaphore, #tpu.memory_space<semaphore_mem>> -> memref<!tpu.dma_semaphore, #tpu.memory_space<semaphore_mem>>
      tpu.enqueue_dma source(%99 : memref<8x16x128xbf16, #tpu.memory_space<any>>) target(%101 : memref<8x16x128xbf16, #tpu.memory_space<vmem>>) target_semaphore(%103 : memref<!tpu.dma_semaphore, #tpu.memory_space<semaphore_mem>>)
      %c1_i32_87 = arith.constant 1 : i32
      %c0_i32_88 = arith.constant 0 : i32
      %c0_i32_89 = arith.constant 0 : i32
      %104 = tpu.memref_slice %arg3[%arg0, %95, %c0_i32_88, %c0_i32_89] : memref<2x16x16x128xbf16, #tpu.memory_space<any>> -> memref<1x1x16x128xbf16, #tpu.memory_space<any>>
      %105 = tpu.memref_squeeze %104 : memref<1x1x16x128xbf16, #tpu.memory_space<any>> -> memref<1x16x128xbf16, #tpu.memory_space<any>>
      %c0_i32_90 = arith.constant 0 : i32
      %c0_i32_91 = arith.constant 0 : i32
      %c0_i32_92 = arith.constant 0 : i32
      %106 = tpu.memref_slice %arg7[%11, %c0_i32_90, %c0_i32_91, %c0_i32_92] : memref<2x10x16x128xbf16, #tpu.memory_space<vmem>> -> memref<1x1x16x128xbf16, #tpu.memory_space<vmem>>
      %107 = tpu.memref_squeeze %106 : memref<1x1x16x128xbf16, #tpu.memory_space<vmem>> -> memref<1x16x128xbf16, #tpu.memory_space<vmem>>
      %108 = tpu.memref_slice %arg9[%11, %c1_i32_87] : memref<2x3x!tpu.dma_semaphore, #tpu.memory_space<semaphore_mem>> -> memref<1x1x!tpu.dma_semaphore, #tpu.memory_space<semaphore_mem>>
      %109 = tpu.memref_squeeze %108 : memref<1x1x!tpu.dma_semaphore, #tpu.memory_space<semaphore_mem>> -> memref<!tpu.dma_semaphore, #tpu.memory_space<semaphore_mem>>
      tpu.enqueue_dma source(%105 : memref<1x16x128xbf16, #tpu.memory_space<any>>) target(%107 : memref<1x16x128xbf16, #tpu.memory_space<vmem>>) target_semaphore(%109 : memref<!tpu.dma_semaphore, #tpu.memory_space<semaphore_mem>>)
      %c2_i32_93 = arith.constant 2 : i32
      %c0_i32_94 = arith.constant 0 : i32
      %c0_i32_95 = arith.constant 0 : i32
      %110 = tpu.memref_slice %arg3[%arg0, %97, %c0_i32_94, %c0_i32_95] : memref<2x16x16x128xbf16, #tpu.memory_space<any>> -> memref<1x1x16x128xbf16, #tpu.memory_space<any>>
      %111 = tpu.memref_squeeze %110 : memref<1x1x16x128xbf16, #tpu.memory_space<any>> -> memref<1x16x128xbf16, #tpu.memory_space<any>>
      %c9_i32_96 = arith.constant 9 : i32
      %c0_i32_97 = arith.constant 0 : i32
      %c0_i32_98 = arith.constant 0 : i32
      %112 = tpu.memref_slice %arg7[%11, %c9_i32_96, %c0_i32_97, %c0_i32_98] : memref<2x10x16x128xbf16, #tpu.memory_space<vmem>> -> memref<1x1x16x128xbf16, #tpu.memory_space<vmem>>
      %113 = tpu.memref_squeeze %112 : memref<1x1x16x128xbf16, #tpu.memory_space<vmem>> -> memref<1x16x128xbf16, #tpu.memory_space<vmem>>
      %114 = tpu.memref_slice %arg9[%11, %c2_i32_93] : memref<2x3x!tpu.dma_semaphore, #tpu.memory_space<semaphore_mem>> -> memref<1x1x!tpu.dma_semaphore, #tpu.memory_space<semaphore_mem>>
      %115 = tpu.memref_squeeze %114 : memref<1x1x!tpu.dma_semaphore, #tpu.memory_space<semaphore_mem>> -> memref<!tpu.dma_semaphore, #tpu.memory_space<semaphore_mem>>
      tpu.enqueue_dma source(%111 : memref<1x16x128xbf16, #tpu.memory_space<any>>) target(%113 : memref<1x16x128xbf16, #tpu.memory_space<vmem>>) target_semaphore(%115 : memref<!tpu.dma_semaphore, #tpu.memory_space<semaphore_mem>>)
    } else {
    }
    %c8_i32 = arith.constant 8 : i32
    %15 = arith.muli %1, %c8_i32 : i32
    %c1_i32_6 = arith.constant 1 : i32
    %16 = arith.subi %15, %c1_i32_6 : i32
    %c0_i32_7 = arith.constant 0 : i32
    %17 = arith.maxsi %16, %c0_i32_7 : i32
    %c8_i32_8 = arith.constant 8 : i32
    %18 = arith.addi %15, %c8_i32_8 : i32
    %c15_i32 = arith.constant 15 : i32
    %19 = arith.minsi %18, %c15_i32 : i32
    %c0_i32_9 = arith.constant 0 : i32
    %c0_i32_10 = arith.constant 0 : i32
    %c0_i32_11 = arith.constant 0 : i32
    %20 = tpu.memref_slice %arg3[%arg0, %15, %c0_i32_10, %c0_i32_11] : memref<2x16x16x128xbf16, #tpu.memory_space<any>> -> memref<1x8x16x128xbf16, #tpu.memory_space<any>>
    %21 = tpu.memref_squeeze %20 : memref<1x8x16x128xbf16, #tpu.memory_space<any>> -> memref<8x16x128xbf16, #tpu.memory_space<any>>
    %c1_i32_12 = arith.constant 1 : i32
    %c0_i32_13 = arith.constant 0 : i32
    %c0_i32_14 = arith.constant 0 : i32
    %22 = tpu.memref_slice %arg7[%11, %c1_i32_12, %c0_i32_13, %c0_i32_14] : memref<2x10x16x128xbf16, #tpu.memory_space<vmem>> -> memref<1x8x16x128xbf16, #tpu.memory_space<vmem>>
    %23 = tpu.memref_squeeze %22 : memref<1x8x16x128xbf16, #tpu.memory_space<vmem>> -> memref<8x16x128xbf16, #tpu.memory_space<vmem>>
    %24 = tpu.memref_slice %arg9[%11, %c0_i32_9] : memref<2x3x!tpu.dma_semaphore, #tpu.memory_space<semaphore_mem>> -> memref<1x1x!tpu.dma_semaphore, #tpu.memory_space<semaphore_mem>>
    %25 = tpu.memref_squeeze %24 : memref<1x1x!tpu.dma_semaphore, #tpu.memory_space<semaphore_mem>> -> memref<!tpu.dma_semaphore, #tpu.memory_space<semaphore_mem>>
    tpu.wait_dma2 semaphore(%25 : memref<!tpu.dma_semaphore, #tpu.memory_space<semaphore_mem>>) src(%21 : memref<8x16x128xbf16, #tpu.memory_space<any>>) dst(%23 : memref<8x16x128xbf16, #tpu.memory_space<vmem>>)
    %c1_i32_15 = arith.constant 1 : i32
    %c0_i32_16 = arith.constant 0 : i32
    %c0_i32_17 = arith.constant 0 : i32
    %26 = tpu.memref_slice %arg3[%arg0, %17, %c0_i32_16, %c0_i32_17] : memref<2x16x16x128xbf16, #tpu.memory_space<any>> -> memref<1x1x16x128xbf16, #tpu.memory_space<any>>
    %27 = tpu.memref_squeeze %26 : memref<1x1x16x128xbf16, #tpu.memory_space<any>> -> memref<1x16x128xbf16, #tpu.memory_space<any>>
    %c0_i32_18 = arith.constant 0 : i32
    %c0_i32_19 = arith.constant 0 : i32
    %c0_i32_20 = arith.constant 0 : i32
    %28 = tpu.memref_slice %arg7[%11, %c0_i32_18, %c0_i32_19, %c0_i32_20] : memref<2x10x16x128xbf16, #tpu.memory_space<vmem>> -> memref<1x1x16x128xbf16, #tpu.memory_space<vmem>>
    %29 = tpu.memref_squeeze %28 : memref<1x1x16x128xbf16, #tpu.memory_space<vmem>> -> memref<1x16x128xbf16, #tpu.memory_space<vmem>>
    %30 = tpu.memref_slice %arg9[%11, %c1_i32_15] : memref<2x3x!tpu.dma_semaphore, #tpu.memory_space<semaphore_mem>> -> memref<1x1x!tpu.dma_semaphore, #tpu.memory_space<semaphore_mem>>
    %31 = tpu.memref_squeeze %30 : memref<1x1x!tpu.dma_semaphore, #tpu.memory_space<semaphore_mem>> -> memref<!tpu.dma_semaphore, #tpu.memory_space<semaphore_mem>>
    tpu.wait_dma2 semaphore(%31 : memref<!tpu.dma_semaphore, #tpu.memory_space<semaphore_mem>>) src(%27 : memref<1x16x128xbf16, #tpu.memory_space<any>>) dst(%29 : memref<1x16x128xbf16, #tpu.memory_space<vmem>>)
    %c2_i32_21 = arith.constant 2 : i32
    %c0_i32_22 = arith.constant 0 : i32
    %c0_i32_23 = arith.constant 0 : i32
    %32 = tpu.memref_slice %arg3[%arg0, %19, %c0_i32_22, %c0_i32_23] : memref<2x16x16x128xbf16, #tpu.memory_space<any>> -> memref<1x1x16x128xbf16, #tpu.memory_space<any>>
    %33 = tpu.memref_squeeze %32 : memref<1x1x16x128xbf16, #tpu.memory_space<any>> -> memref<1x16x128xbf16, #tpu.memory_space<any>>
    %c9_i32 = arith.constant 9 : i32
    %c0_i32_24 = arith.constant 0 : i32
    %c0_i32_25 = arith.constant 0 : i32
    %34 = tpu.memref_slice %arg7[%11, %c9_i32, %c0_i32_24, %c0_i32_25] : memref<2x10x16x128xbf16, #tpu.memory_space<vmem>> -> memref<1x1x16x128xbf16, #tpu.memory_space<vmem>>
    %35 = tpu.memref_squeeze %34 : memref<1x1x16x128xbf16, #tpu.memory_space<vmem>> -> memref<1x16x128xbf16, #tpu.memory_space<vmem>>
    %36 = tpu.memref_slice %arg9[%11, %c2_i32_21] : memref<2x3x!tpu.dma_semaphore, #tpu.memory_space<semaphore_mem>> -> memref<1x1x!tpu.dma_semaphore, #tpu.memory_space<semaphore_mem>>
    %37 = tpu.memref_squeeze %36 : memref<1x1x!tpu.dma_semaphore, #tpu.memory_space<semaphore_mem>> -> memref<!tpu.dma_semaphore, #tpu.memory_space<semaphore_mem>>
    tpu.wait_dma2 semaphore(%37 : memref<!tpu.dma_semaphore, #tpu.memory_space<semaphore_mem>>) src(%33 : memref<1x16x128xbf16, #tpu.memory_space<any>>) dst(%35 : memref<1x16x128xbf16, #tpu.memory_space<vmem>>)
    %c1_i32_26 = arith.constant 1 : i32
    %38 = arith.addi %arg2, %c1_i32_26 : i32
    %c2_i32_27 = arith.constant 2 : i32
    %39 = arith.cmpi slt, %38, %c2_i32_27 : i32
    %40 = arith.extui %39 : i1 to i32
    %c0_i32_28 = arith.constant 0 : i32
    %41 = arith.cmpi ne, %40, %c0_i32_28 : i32
    scf.if %41 {
      %c1_i32_76 = arith.constant 1 : i32
      %93 = arith.addi %1, %c1_i32_76 : i32
      %c1_i32_77 = arith.constant 1 : i32
      %94 = arith.subi %c1_i32_77, %11 : i32
      %c8_i32_78 = arith.constant 8 : i32
      %95 = arith.muli %93, %c8_i32_78 : i32
      %c1_i32_79 = arith.constant 1 : i32
      %96 = arith.subi %95, %c1_i32_79 : i32
      %c0_i32_80 = arith.constant 0 : i32
      %97 = arith.maxsi %96, %c0_i32_80 : i32
      %c8_i32_81 = arith.constant 8 : i32
      %98 = arith.addi %95, %c8_i32_81 : i32
      %c15_i32_82 = arith.constant 15 : i32
      %99 = arith.minsi %98, %c15_i32_82 : i32
      %c0_i32_83 = arith.constant 0 : i32
      %c0_i32_84 = arith.constant 0 : i32
      %c0_i32_85 = arith.constant 0 : i32
      %100 = tpu.memref_slice %arg3[%arg0, %95, %c0_i32_84, %c0_i32_85] : memref<2x16x16x128xbf16, #tpu.memory_space<any>> -> memref<1x8x16x128xbf16, #tpu.memory_space<any>>
      %101 = tpu.memref_squeeze %100 : memref<1x8x16x128xbf16, #tpu.memory_space<any>> -> memref<8x16x128xbf16, #tpu.memory_space<any>>
      %c1_i32_86 = arith.constant 1 : i32
      %c0_i32_87 = arith.constant 0 : i32
      %c0_i32_88 = arith.constant 0 : i32
      %102 = tpu.memref_slice %arg7[%94, %c1_i32_86, %c0_i32_87, %c0_i32_88] : memref<2x10x16x128xbf16, #tpu.memory_space<vmem>> -> memref<1x8x16x128xbf16, #tpu.memory_space<vmem>>
      %103 = tpu.memref_squeeze %102 : memref<1x8x16x128xbf16, #tpu.memory_space<vmem>> -> memref<8x16x128xbf16, #tpu.memory_space<vmem>>
      %104 = tpu.memref_slice %arg9[%94, %c0_i32_83] : memref<2x3x!tpu.dma_semaphore, #tpu.memory_space<semaphore_mem>> -> memref<1x1x!tpu.dma_semaphore, #tpu.memory_space<semaphore_mem>>
      %105 = tpu.memref_squeeze %104 : memref<1x1x!tpu.dma_semaphore, #tpu.memory_space<semaphore_mem>> -> memref<!tpu.dma_semaphore, #tpu.memory_space<semaphore_mem>>
      tpu.enqueue_dma source(%101 : memref<8x16x128xbf16, #tpu.memory_space<any>>) target(%103 : memref<8x16x128xbf16, #tpu.memory_space<vmem>>) target_semaphore(%105 : memref<!tpu.dma_semaphore, #tpu.memory_space<semaphore_mem>>)
      %c1_i32_89 = arith.constant 1 : i32
      %c0_i32_90 = arith.constant 0 : i32
      %c0_i32_91 = arith.constant 0 : i32
      %106 = tpu.memref_slice %arg3[%arg0, %97, %c0_i32_90, %c0_i32_91] : memref<2x16x16x128xbf16, #tpu.memory_space<any>> -> memref<1x1x16x128xbf16, #tpu.memory_space<any>>
      %107 = tpu.memref_squeeze %106 : memref<1x1x16x128xbf16, #tpu.memory_space<any>> -> memref<1x16x128xbf16, #tpu.memory_space<any>>
      %c0_i32_92 = arith.constant 0 : i32
      %c0_i32_93 = arith.constant 0 : i32
      %c0_i32_94 = arith.constant 0 : i32
      %108 = tpu.memref_slice %arg7[%94, %c0_i32_92, %c0_i32_93, %c0_i32_94] : memref<2x10x16x128xbf16, #tpu.memory_space<vmem>> -> memref<1x1x16x128xbf16, #tpu.memory_space<vmem>>
      %109 = tpu.memref_squeeze %108 : memref<1x1x16x128xbf16, #tpu.memory_space<vmem>> -> memref<1x16x128xbf16, #tpu.memory_space<vmem>>
      %110 = tpu.memref_slice %arg9[%94, %c1_i32_89] : memref<2x3x!tpu.dma_semaphore, #tpu.memory_space<semaphore_mem>> -> memref<1x1x!tpu.dma_semaphore, #tpu.memory_space<semaphore_mem>>
      %111 = tpu.memref_squeeze %110 : memref<1x1x!tpu.dma_semaphore, #tpu.memory_space<semaphore_mem>> -> memref<!tpu.dma_semaphore, #tpu.memory_space<semaphore_mem>>
      tpu.enqueue_dma source(%107 : memref<1x16x128xbf16, #tpu.memory_space<any>>) target(%109 : memref<1x16x128xbf16, #tpu.memory_space<vmem>>) target_semaphore(%111 : memref<!tpu.dma_semaphore, #tpu.memory_space<semaphore_mem>>)
      %c2_i32_95 = arith.constant 2 : i32
      %c0_i32_96 = arith.constant 0 : i32
      %c0_i32_97 = arith.constant 0 : i32
      %112 = tpu.memref_slice %arg3[%arg0, %99, %c0_i32_96, %c0_i32_97] : memref<2x16x16x128xbf16, #tpu.memory_space<any>> -> memref<1x1x16x128xbf16, #tpu.memory_space<any>>
      %113 = tpu.memref_squeeze %112 : memref<1x1x16x128xbf16, #tpu.memory_space<any>> -> memref<1x16x128xbf16, #tpu.memory_space<any>>
      %c9_i32_98 = arith.constant 9 : i32
      %c0_i32_99 = arith.constant 0 : i32
      %c0_i32_100 = arith.constant 0 : i32
      %114 = tpu.memref_slice %arg7[%94, %c9_i32_98, %c0_i32_99, %c0_i32_100] : memref<2x10x16x128xbf16, #tpu.memory_space<vmem>> -> memref<1x1x16x128xbf16, #tpu.memory_space<vmem>>
      %115 = tpu.memref_squeeze %114 : memref<1x1x16x128xbf16, #tpu.memory_space<vmem>> -> memref<1x16x128xbf16, #tpu.memory_space<vmem>>
      %116 = tpu.memref_slice %arg9[%94, %c2_i32_95] : memref<2x3x!tpu.dma_semaphore, #tpu.memory_space<semaphore_mem>> -> memref<1x1x!tpu.dma_semaphore, #tpu.memory_space<semaphore_mem>>
      %117 = tpu.memref_squeeze %116 : memref<1x1x!tpu.dma_semaphore, #tpu.memory_space<semaphore_mem>> -> memref<!tpu.dma_semaphore, #tpu.memory_space<semaphore_mem>>
      tpu.enqueue_dma source(%113 : memref<1x16x128xbf16, #tpu.memory_space<any>>) target(%115 : memref<1x16x128xbf16, #tpu.memory_space<vmem>>) target_semaphore(%117 : memref<!tpu.dma_semaphore, #tpu.memory_space<semaphore_mem>>)
    } else {
    }
    %42 = arith.index_cast %11 : i32 to index
    %c0 = arith.constant 0 : index
    %c0_29 = arith.constant 0 : index
    %c0_30 = arith.constant 0 : index
    %43 = vector.load %arg7[%42, %c0, %c0_29, %c0_30] : memref<2x10x16x128xbf16, #tpu.memory_space<vmem>>, vector<1x10x16x128xbf16>
    %44 = vector.shape_cast %43 : vector<1x10x16x128xbf16> to vector<10x16x128xbf16>
    %c0_31 = arith.constant 0 : index
    %c0_32 = arith.constant 0 : index
    %c128 = arith.constant 128 : index
    %45 = vector.load %arg8[%c0_31, %c0_32, %c128] : memref<10x16x384xbf16, #tpu.memory_space<vmem>>, vector<10x16x128xbf16>
    tpu.vector_store %arg8[%c0_31, %c0_32, %c128], %44 {strides = array<i32>} : memref<10x16x384xbf16, #tpu.memory_space<vmem>>, vector<10x16x128xbf16>,
    %cst = arith.constant 0.000000e+00 : bf16
    %46 = vector.broadcast %cst : bf16 to vector<10x1x128xbf16>
    %c0_33 = arith.constant 0 : index
    %c0_34 = arith.constant 0 : index
    %c0_35 = arith.constant 0 : index
    %47 = vector.load %arg8[%c0_33, %c0_34, %c0_35] : memref<10x16x384xbf16, #tpu.memory_space<vmem>>, vector<10x1x128xbf16>
    tpu.vector_store %arg8[%c0_33, %c0_34, %c0_35], %46 {strides = array<i32>} : memref<10x16x384xbf16, #tpu.memory_space<vmem>>, vector<10x1x128xbf16>,
    %48 = vector.extract_strided_slice %44 {offsets = [0, 0, 0], sizes = [10, 15, 128], strides = [1, 1, 1]} : vector<10x16x128xbf16> to vector<10x15x128xbf16>
    %c0_36 = arith.constant 0 : index
    %c1 = arith.constant 1 : index
    %c0_37 = arith.constant 0 : index
    %49 = vector.load %arg8[%c0_36, %c1, %c0_37] : memref<10x16x384xbf16, #tpu.memory_space<vmem>>, vector<10x15x128xbf16>
    tpu.vector_store %arg8[%c0_36, %c1, %c0_37], %48 {strides = array<i32>} : memref<10x16x384xbf16, #tpu.memory_space<vmem>>, vector<10x15x128xbf16>,
    %50 = vector.extract_strided_slice %44 {offsets = [0, 1, 0], sizes = [10, 15, 128], strides = [1, 1, 1]} : vector<10x16x128xbf16> to vector<10x15x128xbf16>
    %c0_38 = arith.constant 0 : index
    %c0_39 = arith.constant 0 : index
    %c256 = arith.constant 256 : index
    %51 = vector.load %arg8[%c0_38, %c0_39, %c256] : memref<10x16x384xbf16, #tpu.memory_space<vmem>>, vector<10x15x128xbf16>
    tpu.vector_store %arg8[%c0_38, %c0_39, %c256], %50 {strides = array<i32>} : memref<10x16x384xbf16, #tpu.memory_space<vmem>>, vector<10x15x128xbf16>,
    %cst_40 = arith.constant 0.000000e+00 : bf16
    %52 = vector.broadcast %cst_40 : bf16 to vector<10x1x128xbf16>
    %c0_41 = arith.constant 0 : index
    %c15 = arith.constant 15 : index
    %c256_42 = arith.constant 256 : index
    %53 = vector.load %arg8[%c0_41, %c15, %c256_42] : memref<10x16x384xbf16, #tpu.memory_space<vmem>>, vector<10x1x128xbf16>
    tpu.vector_store %arg8[%c0_41, %c15, %c256_42], %52 {strides = array<i32>} : memref<10x16x384xbf16, #tpu.memory_space<vmem>>, vector<10x1x128xbf16>,
    %c0_i32_43 = arith.constant 0 : i32
    %54 = arith.cmpi eq, %1, %c0_i32_43 : i32
    %55 = arith.extui %54 : i1 to i32
    %c0_i32_44 = arith.constant 0 : i32
    %56 = arith.cmpi ne, %55, %c0_i32_44 : i32
    scf.if %56 {
      %cst_76 = arith.constant 0.000000e+00 : bf16
      %93 = vector.broadcast %cst_76 : bf16 to vector<1x16x384xbf16>
      %c0_77 = arith.constant 0 : index
      %c0_78 = arith.constant 0 : index
      %c0_79 = arith.constant 0 : index
      %94 = vector.load %arg8[%c0_77, %c0_78, %c0_79] : memref<10x16x384xbf16, #tpu.memory_space<vmem>>, vector<1x16x384xbf16>
      tpu.vector_store %arg8[%c0_77, %c0_78, %c0_79], %93 {strides = array<i32>} : memref<10x16x384xbf16, #tpu.memory_space<vmem>>, vector<1x16x384xbf16>,
    } else {
    }
    %c1_i32_45 = arith.constant 1 : i32
    %57 = arith.cmpi eq, %1, %c1_i32_45 : i32
    %58 = arith.extui %57 : i1 to i32
    %c0_i32_46 = arith.constant 0 : i32
    %59 = arith.cmpi ne, %58, %c0_i32_46 : i32
    scf.if %59 {
      %cst_76 = arith.constant 0.000000e+00 : bf16
      %93 = vector.broadcast %cst_76 : bf16 to vector<1x16x384xbf16>
      %c9 = arith.constant 9 : index
      %c0_77 = arith.constant 0 : index
      %c0_78 = arith.constant 0 : index
      %94 = vector.load %arg8[%c9, %c0_77, %c0_78] : memref<10x16x384xbf16, #tpu.memory_space<vmem>>, vector<1x16x384xbf16>
      tpu.vector_store %arg8[%c9, %c0_77, %c0_78], %93 {strides = array<i32>} : memref<10x16x384xbf16, #tpu.memory_space<vmem>>, vector<1x16x384xbf16>,
    } else {
    }
    %c0_47 = arith.constant 0 : index
    %c0_48 = arith.constant 0 : index
    %c0_49 = arith.constant 0 : index
    %60 = vector.load %arg8[%c0_47, %c0_48, %c0_49] : memref<10x16x384xbf16, #tpu.memory_space<vmem>>, vector<8x16x384xbf16>
    %61 = vector.shape_cast %60 : vector<8x16x384xbf16> to vector<128x384xbf16>
    %c0_50 = arith.constant 0 : index
    %c0_51 = arith.constant 0 : index
    %c0_52 = arith.constant 0 : index
    %62 = vector.load %arg4[%c0_50, %c0_51, %c0_52] : memref<3x384x128xbf16, #tpu.memory_space<vmem>>, vector<1x384x128xbf16>
    %63 = vector.shape_cast %62 : vector<1x384x128xbf16> to vector<384x128xbf16>
    %cst_53 = arith.constant dense<0.000000e+00> : vector<128x128xf32>
    %64 = tpu.matmul %61, %63, %cst_53 {dimension_numbers = #tpu.dot_dimension_numbers<[1], [0], [0], [1], [0, 0, 1, 1], [], []>} : vector<128x384xbf16>, vector<384x128xbf16>, vector<128x128xf32> -> vector<128x128xf32>
    %c1_54 = arith.constant 1 : index
    %c0_55 = arith.constant 0 : index
    %c0_56 = arith.constant 0 : index
    %65 = vector.load %arg8[%c1_54, %c0_55, %c0_56] : memref<10x16x384xbf16, #tpu.memory_space<vmem>>, vector<8x16x384xbf16>
    %66 = vector.shape_cast %65 : vector<8x16x384xbf16> to vector<128x384xbf16>
    %c1_57 = arith.constant 1 : index
    %c0_58 = arith.constant 0 : index
    %c0_59 = arith.constant 0 : index
    %67 = vector.load %arg4[%c1_57, %c0_58, %c0_59] : memref<3x384x128xbf16, #tpu.memory_space<vmem>>, vector<1x384x128xbf16>
    %68 = vector.shape_cast %67 : vector<1x384x128xbf16> to vector<384x128xbf16>
    %cst_60 = arith.constant dense<0.000000e+00> : vector<128x128xf32>
    %69 = tpu.matmul %66, %68, %cst_60 {dimension_numbers = #tpu.dot_dimension_numbers<[1], [0], [0], [1], [0, 0, 1, 1], [], []>} : vector<128x384xbf16>, vector<384x128xbf16>, vector<128x128xf32> -> vector<128x128xf32>
    %70 = arith.addf %64, %69 : vector<128x128xf32>
    %c2 = arith.constant 2 : index
    %c0_61 = arith.constant 0 : index
    %c0_62 = arith.constant 0 : index
    %71 = vector.load %arg8[%c2, %c0_61, %c0_62] : memref<10x16x384xbf16, #tpu.memory_space<vmem>>, vector<8x16x384xbf16>
    %72 = vector.shape_cast %71 : vector<8x16x384xbf16> to vector<128x384xbf16>
    %c2_63 = arith.constant 2 : index
    %c0_64 = arith.constant 0 : index
    %c0_65 = arith.constant 0 : index
    %73 = vector.load %arg4[%c2_63, %c0_64, %c0_65] : memref<3x384x128xbf16, #tpu.memory_space<vmem>>, vector<1x384x128xbf16>
    %74 = vector.shape_cast %73 : vector<1x384x128xbf16> to vector<384x128xbf16>
    %cst_66 = arith.constant dense<0.000000e+00> : vector<128x128xf32>
    %75 = tpu.matmul %72, %74, %cst_66 {dimension_numbers = #tpu.dot_dimension_numbers<[1], [0], [0], [1], [0, 0, 1, 1], [], []>} : vector<128x384xbf16>, vector<384x128xbf16>, vector<128x128xf32> -> vector<128x128xf32>
    %76 = arith.addf %70, %75 : vector<128x128xf32>
    %c0_67 = arith.constant 0 : index
    %c0_68 = arith.constant 0 : index
    %77 = vector.load %arg5[%c0_67, %c0_68] : memref<1x128xf32, #tpu.memory_space<vmem>>, vector<1x128xf32>
    %78 = vector.broadcast %77 : vector<1x128xf32> to vector<128x128xf32>
    %79 = arith.addf %76, %78 : vector<128x128xf32>
    %cst_69 = arith.constant 0.000000e+00 : f32
    %80 = vector.broadcast %cst_69 : f32 to vector<128x128xf32>
    %81 = arith.cmpf ogt, %79, %80 : vector<128x128xf32>
    %cst_70 = arith.constant 2.000000e-01 : f32
    %82 = vector.broadcast %cst_70 : f32 to vector<128x128xf32>
    %83 = arith.mulf %82, %79 : vector<128x128xf32>
    %84 = arith.select %81, %79, %83 : vector<128x128xi1>, vector<128x128xf32>
    %85 = vector.extract_strided_slice %44 {offsets = [1, 0, 0], sizes = [8, 16, 128], strides = [1, 1, 1]} : vector<10x16x128xbf16> to vector<8x16x128xbf16>
    %86 = arith.extf %85 : vector<8x16x128xbf16> to vector<8x16x128xf32>
    %87 = vector.shape_cast %86 : vector<8x16x128xf32> to vector<128x128xf32>
    %88 = arith.addf %84, %87 : vector<128x128xf32>
    %cst_71 = arith.constant 0.707106769 : f32
    %89 = vector.broadcast %cst_71 : f32 to vector<128x128xf32>
    %90 = arith.mulf %88, %89 : vector<128x128xf32>
    %91 = vector.shape_cast %90 : vector<128x128xf32> to vector<1x8x16x128xf32>
    %c0_72 = arith.constant 0 : index
    %c0_73 = arith.constant 0 : index
    %c0_74 = arith.constant 0 : index
    %c0_75 = arith.constant 0 : index
    %92 = vector.load %arg6[%c0_72, %c0_73, %c0_74, %c0_75] : memref<1x8x16x128xf32, #tpu.memory_space<vmem>>, vector<1x8x16x128xf32>
    tpu.vector_store %arg6[%c0_72, %c0_73, %c0_74, %c0_75], %91 {strides = array<i32>} : memref<1x8x16x128xf32, #tpu.memory_space<vmem>>, vector<1x8x16x128xf32>,
    return
  }
  func.func @transform_1(%arg0: i32, %arg1: i32, %arg2: i32) -> (i32, i32, i32) {
    %c0_i32 = arith.constant 0 : i32
    %c0_i32_0 = arith.constant 0 : i32
    %c0_i32_1 = arith.constant 0 : i32
    %c0_i32_2 = arith.constant 0 : i32
    return %c0_i32, %c0_i32_0, %c0_i32_1 : i32, i32, i32
  }
  func.func @transform_2(%arg0: i32, %arg1: i32, %arg2: i32) -> (i32, i32) {
    %c0_i32 = arith.constant 0 : i32
    %c0_i32_0 = arith.constant 0 : i32
    %c0_i32_1 = arith.constant 0 : i32
    return %c0_i32, %c0_i32_0 : i32, i32
  }
  func.func @transform_3(%arg0: i32, %arg1: i32, %arg2: i32) -> (i32, i32, i32, i32) {
    %c2_i32 = arith.constant 2 : i32
    %0 = arith.muli %arg1, %c2_i32 : i32
    %1 = arith.addi %0, %arg2 : i32
    %c0_i32 = arith.constant 0 : i32
    %c0_i32_0 = arith.constant 0 : i32
    %c0_i32_1 = arith.constant 0 : i32
    return %arg0, %1, %c0_i32, %c0_i32_0 : i32, i32, i32, i32
  }
}

</mosaic_0001>

<llo_original>
// kernel: tpu_custom_call.1
$region0: #{tpu_custom_call.1}
  #allocation0 [shape = 'u32[]', space=smem, size = 0x4, offset = 0x4, fixed_abs, tag = 'smem constant byte address 0x4 - core index']
  #allocation1 [shape = 'u32[144,128]{1,0:T(1,128)}', space=vmem, size = 0x12000, scoped, tag = 'internal scratch']
  #allocation2 [shape = 'bf16[2,10,16,128]{3,2,1,0:T(16,128)(2,1)}', space=vmem, size = 0x14000, scoped, tag = 'scratch operand']
  #allocation3 [shape = 'bf16[10,16,384]{2,1,0:T(16,128)(2,1)}', space=vmem, size = 0x1e000, scoped, tag = 'scratch operand']
  #allocation4 [shape = 's32[6]{0}', space=sflag, size = 0x18, scoped, tag = 'scratch operand']
  #allocation9 [shape = 's32[]', space=sflag, size = 0x4, offset = 0, fixed_abs, tag = 'sflag constant byte address 0x0 - dummy sync flag']
  #allocation10 [shape = 's32[]', space=sflag, size = 0x4, offset = 0, fixed_abs, tag = 'sflag constant byte address 0x0 - dummy sync flag']
  #allocation11 [shape = 'u32[]', space=smem, size = 0x4, offset = 0x44, fixed_abs, tag = 'smem constant byte address 0x44 - assertion arg 0']
  #allocation12 [shape = 'u32[]', space=smem, size = 0x4, offset = 0x48, fixed_abs, tag = 'smem constant byte address 0x48 - assertion arg 1']
  #allocation13 [shape = 's32[]', space=sflag, size = 0x4, offset = 0, fixed_abs, tag = 'sflag constant byte address 0x0 - dummy sync flag']
  #allocation14 [shape = 's32[]', space=sflag, size = 0x4, offset = 0, fixed_abs, tag = 'sflag constant byte address 0x0 - dummy sync flag']
  #allocation15 [shape = 's32[]', space=sflag, size = 0x4, offset = 0, fixed_abs, tag = 'sflag constant byte address 0x0 - dummy sync flag']
  #allocation16 [shape = 's32[]', space=sflag, size = 0x4, offset = 0, fixed_abs, tag = 'sflag constant byte address 0x0 - dummy sync flag']
  #allocation17 [shape = 's32[]', space=sflag, size = 0x4, offset = 0, fixed_abs, tag = 'sflag constant byte address 0x0 - dummy sync flag']
  #allocation18 [shape = 's32[]', space=sflag, size = 0x4, offset = 0, fixed_abs, tag = 'sflag constant byte address 0x0 - dummy sync flag']
  #allocation19 [shape = 's32[]', space=sflag, size = 0x4, offset = 0, fixed_abs, tag = 'sflag constant byte address 0x0 - dummy sync flag']
  #allocation20 [shape = 's32[]', space=sflag, size = 0x4, offset = 0, fixed_abs, tag = 'sflag constant byte address 0x0 - dummy sync flag']
  #allocation21 [shape = 's32[]', space=sflag, size = 0x4, offset = 0, fixed_abs, tag = 'sflag constant byte address 0x0 - dummy sync flag']
  #allocation22 [shape = 's32[]', space=sflag, size = 0x4, offset = 0, fixed_abs, tag = 'sflag constant byte address 0x0 - dummy sync flag']
  %s0 = inlined_call_operand.hbm [shape: bf16[2,16,16,128], index: 0, kind: input, shape index: {}]
  %s1 = inlined_call_operand.hbm [shape: bf16[3,384,128], index: 1, kind: input, shape index: {}]
  %s2 = inlined_call_operand.vmem [shape: f32[1,128], index: 2, kind: input, shape index: {}]
  %s3 = inlined_call_operand.hbm [shape: f32[2,16,16,128], index: 3, kind: output, shape index: {}]
  %s4 = sld [smem:[#allocation0]]
  $region85: #{tpu_custom_call.1} parent=0
    _
  %s6 = ssub.s32 1, %s4
  %s7 = scalar_select 0, %s6, %s4
  $region1: #{tpu_custom_call.1} parent=0
    #allocation5 [shape = 'u8[294912]{0}', space=vmem, size = 0x48000, scoped, tag = 'input window, operand 1, single buffered']
    #allocation6 [shape = 's32[2]{0}', space=sflag, size = 0x8, scoped, tag = 'scoped memory for tpu_custom_call.1']
    #allocation7 [shape = 's32[2]{0}', space=sflag, size = 0x8, scoped, tag = 'scoped memory for tpu_custom_call.1']
    #allocation8 [shape = 'u8[131072]{0}', space=vmem, size = 0x20000, scoped, tag = 'output window, operand 0']
    %8 = vsyncpa [#allocation6], 0
    %9 = vsyncpa [#allocation7], 0
    %s10 = scalar_lea.sflag [#allocation7], 1
    %11 = vsyncpa %s10, 0
    loop: start=0, step=1, limit=6
    $region2: #{tpu_custom_call.1} parent=1 // loop_pre_header
      _
    $region3: #{tpu_custom_call.1} parent=1 // loop_header
      %s13 = sphi 0, %s17
      %p14 = scmp.ge.s32.totalorder %s13, 6
      %s20 = sphi 0, %s39
      %s21 = sphi 0, %s35
      %s22 = sphi 0, %s31
      %s23 = sphi 0, %s20
      %s24 = sphi 0, %s21
      %s25 = sphi 0, %s22
      %s26 = sphi 0, %s23
      %s27 = sphi 0, %s24
      %s28 = sphi 0, %s25
      %s40 = sphi 0, %s40
      %s42 = sphi 0, %s40
      %s43 = sphi 0, %s42
      %s57 = sphi 0, %s43
      %s61 = sphi 0, %s61
      %s63 = sphi 0, %s61
      %s64 = sphi 0, %s63
      %s78 = sphi 0, %s64
      %s90 = sphi 0, %s92
      %s93 = sphi 0, %s90
      %s94 = sphi 0, %s93
      %s110 = sphi 0, %s94
    $region4: #{tpu_custom_call.1} parent=1 // loop_header_branch
      %16 = sbr.rel (%p14) target = $region8
    $region5: #{tpu_custom_call.1} parent=1 // loop_body
      %s18 = ssub.s32 %s13, 1
      %s19 = ssub.s32 %s13, 2
      %s29 = sadd.s32 1, %s22
      %p30 = scmp.ge.s32.totalorder %s29, 2
      %s31 = scalar_select %p30, 0, %s29
      %s32 = sadd.s32 1, %s21
      %s33 = scalar_select %p30, %s32, %s21
      %p34 = scmp.ge.s32.totalorder %s33, 1
      %s35 = scalar_select %p34, 0, %s33
      %s36 = sadd.s32 1, %s20
      %s37 = scalar_select %p34, %s36, %s20
      %p38 = scmp.ge.s32.totalorder %s37, 2
      %s39 = scalar_select %p38, 0, %s37
      %s41 = sadd.s32 %s40, 1
      %p44 = scmp.eq.s32.totalorder %s13, 3
      %p45 = scmp.ne.s32.totalorder %s40, %s42
      %p46 = scmp.eq.s32.totalorder %s13, 0
      %p47 = por %p45, %p46
      %p48 = scmp.ne.s32.totalorder %s40, %s42
      %p49 = scmp.eq.s32.totalorder %s18, 3
      %p50 = por %p48, %p49
      %p51 = scmp.ne.s32.totalorder %s42, %s43
      %p52 = scmp.eq.s32.totalorder %s18, 0
      %p53 = por %p51, %p52
      %p54 = scmp.ne.s32.totalorder %s42, %s43
      %p55 = scmp.eq.s32.totalorder %s19, 3
      %p56 = por %p54, %p55
      %p58 = scmp.ne.s32.totalorder %s43, %s57
      %p59 = scmp.eq.s32.totalorder %s19, 0
      %p60 = por %p58, %p59
      %s62 = sadd.s32 %s61, 1
      %p65 = scmp.eq.s32.totalorder %s13, 3
      %p66 = scmp.ne.s32.totalorder %s61, %s63
      %p67 = scmp.eq.s32.totalorder %s13, 0
      %p68 = por %p66, %p67
      %p69 = scmp.ne.s32.totalorder %s61, %s63
      %p70 = scmp.eq.s32.totalorder %s18, 3
      %p71 = por %p69, %p70
      %p72 = scmp.ne.s32.totalorder %s63, %s64
      %p73 = scmp.eq.s32.totalorder %s18, 0
      %p74 = por %p72, %p73
      %p75 = scmp.ne.s32.totalorder %s63, %s64
      %p76 = scmp.eq.s32.totalorder %s19, 3
      %p77 = por %p75, %p76
      %p79 = scmp.ne.s32.totalorder %s64, %s78
      %p80 = scmp.eq.s32.totalorder %s19, 0
      %p81 = por %p79, %p80
      %s82 = smul.u32 %s21, 2
      %s83 = sadd.s32 %s82, %s22
      %s84 = smul.u32 %s35, 2
      %s85 = sadd.s32 %s84, %s31
      %s86 = ssub.s32 %s20, %s39
      %s87 = ssub.s32 %s83, %s85
      %s88 = sor.u32 %s86, %s87
      %p89 = scmp.eq.s32.totalorder %s88, 0
      %s91 = sadd.s32 %s90, 1
      %s92 = scalar_select %p89, %s90, %s91
      %p95 = pneg %p89
      %p96 = scmp.eq.s32.totalorder %s13, 3
      %p97 = por %p95, %p96
      %p98 = scmp.ne.s32.totalorder %s90, %s93
      %p99 = scmp.eq.s32.totalorder %s13, 0
      %p100 = por %p98, %p99
      %p101 = scmp.ne.s32.totalorder %s90, %s93
      %p102 = scmp.eq.s32.totalorder %s18, 3
      %p103 = por %p101, %p102
      %p104 = scmp.ne.s32.totalorder %s93, %s94
      %p105 = scmp.eq.s32.totalorder %s18, 0
      %p106 = por %p104, %p105
      %p107 = scmp.ne.s32.totalorder %s93, %s94
      %p108 = scmp.eq.s32.totalorder %s19, 3
      %p109 = por %p107, %p108
      %p111 = scmp.ne.s32.totalorder %s94, %s110
      %p112 = scmp.eq.s32.totalorder %s19, 0
      %p113 = por %p111, %p112
      %p114 = scmp.le.s32.totalorder 1, %s13
      %p115 = scmp.lt.s32.totalorder %s13, 5
      %p116 = pnand %p114, %p115
      %p117 = pneg %p116
      // Predicated region
      $region9: #{tpu_custom_call.1} parent=5 // pred_check
        _
      $region10: #{tpu_custom_call.1} parent=5 // pred_check_branch
        %119 = sbr.rel (%p116) target = $region12
      $region11: #{tpu_custom_call.1} parent=5 // pred_region
        %s120 = ssub.s32 %s13, 1
        // Predicated region
        $region13: #{tpu_custom_call.1} parent=11 // pred_check
          %p121 = pneg %p53
        $region14: #{tpu_custom_call.1} parent=11 // pred_check_branch
          %123 = sbr.rel (%p121) target = $region16
        $region15: #{tpu_custom_call.1} parent=11 // pred_region
          %s125 = ssub.s32 9216, 9216
          %126 = vsyncadd [#allocation6], %s125
          %s127 = sshll.u32 [#allocation5], 4
          %s128 = int_to_ptr.vmem [resolvable:$true] %s127
          %133 = dma.hbm_to_vmem [thread:$0]  %s1, 9216, %s128, [#allocation6], 64, 64, 4
        $region16: #{tpu_custom_call.1} parent=11 // pred_fallthru
          _
        // Predicated region
        $region17: #{tpu_custom_call.1} parent=11 // pred_check
          %p134 = pneg %p74
        $region18: #{tpu_custom_call.1} parent=11 // pred_check_branch
          %136 = sbr.rel (%p134) target = $region20
        $region19: #{tpu_custom_call.1} parent=11 // pred_region
          _
        $region20: #{tpu_custom_call.1} parent=11 // pred_fallthru
          _
      $region12: #{tpu_custom_call.1} parent=5 // pred_fallthru
        _
      %p137 = scmp.lt.s32.totalorder %s13, 4
      // Predicated region
      $region21: #{tpu_custom_call.1} parent=5 // pred_check
        %p138 = pneg %p137
      $region22: #{tpu_custom_call.1} parent=5 // pred_check_branch
        %140 = sbr.rel (%p138) target = $region24
      $region23: #{tpu_custom_call.1} parent=5 // pred_region
        _
      $region24: #{tpu_custom_call.1} parent=5 // pred_fallthru
        _
      %p141 = scmp.le.s32.totalorder 1, %s13
      %p142 = scmp.lt.s32.totalorder %s13, 5
      %p143 = pnand %p141, %p142
      %p144 = pneg %p143
      // Predicated region
      $region25: #{tpu_custom_call.1} parent=5 // pred_check
        _
      $region26: #{tpu_custom_call.1} parent=5 // pred_check_branch
        %146 = sbr.rel (%p143) target = $region28
      $region27: #{tpu_custom_call.1} parent=5 // pred_region
        %s147 = ssub.s32 %s13, 1
        // Predicated region
        $region29: #{tpu_custom_call.1} parent=27 // pred_check
          %p148 = pneg %p53
        $region30: #{tpu_custom_call.1} parent=27 // pred_check_branch
          %150 = sbr.rel (%p148) target = $region32
        $region31: #{tpu_custom_call.1} parent=27 // pred_region
          %151 = dma.done [#allocation6], 9216
        $region32: #{tpu_custom_call.1} parent=27 // pred_fallthru
          _
        %p152 = pneg %p53
        %p153 = pneg %p50
        %p154 = pneg %p74
        %p155 = pneg %p71
        %p156 = pneg %p106
        %p157 = pneg %p103
        %s158 = sand.u32 %s93, 1
        %s159 = scalar_lea.sflag [#allocation7], %s158
        %s160 = sand.u32 %s93, 1
        %s161 = smul.addr %s160, 128
        %s162 = scalar_lea.vmem [#allocation8], %s161
        %s163 = smul.u32 %s24, 2
        %s164 = sadd.s32 %s163, %s25
        %s165 = smul.u32 8, %s164
        %s167 = smul.u32 %s24, 2
        %s168 = sadd.s32 %s167, %s25
        %p169 = scmp.lt.s32.totalorder %s25, 0
        %s170 = ssub.s32 0, %s25
        %s171 = scalar_select %p169, %s170, %s25
        %s172 = sand.u32 %s171, 1
        %s173 = ssub.s32 0, %s172
        %s174 = scalar_select %p169, %s173, %s172
        %p175 = scmp.ne.s32.totalorder %s174, 0
        %p176 = scmp.lt.s32.totalorder %s174, 0
        %p177 = pnand %p176, %p175
        %p178 = pneg %p177
        %s179 = sadd.s32 %s174, 2
        %s180 = scalar_select %p178, %s179, %s174
        %p181 = scmp.eq.s32.totalorder %s25, 0
        // Predicated region
        $region33: #{tpu_custom_call.1} parent=27 // pred_check
          %p182 = pneg %p181
        $region34: #{tpu_custom_call.1} parent=27 // pred_check_branch
          %184 = sbr.rel (%p182) target = $region36
        $region35: #{tpu_custom_call.1} parent=27 // pred_region
          %s185 = smul.u32 %s168, 8
          %s186 = ssub.s32 %s185, 1
          %p187 = scmp.gt.s32.totalorder %s186, 0
          %s188 = scalar_select %p187, %s186, 0
          %s189 = sadd.s32 %s185, 8
          %p190 = scmp.lt.s32.totalorder %s189, 15
          %s191 = scalar_select %p190, %s189, 15
          %s192 = smul.u32 %s185, 2
          %s193 = smul.u32 %s23, 32
          %s194 = sadd.s32 %s192, %s193
          %s195 = smul.addr %s194, 64
          %s196 = scalar_lea.hbm %s0, %s195
          %s197 = smul.u32 %s180, 10
          %s198 = sadd.s32 1, %s197
          %s199 = smul.addr %s198, 8
          %s200 = scalar_lea.vmem [#allocation2], %s199
          %s201 = smul.u32 %s180, 3
          %s202 = scalar_lea.sflag [#allocation4], %s201
          // Predicated region
          $region37: #{tpu_custom_call.1} parent=35 // pred_check
            _
          $region38: #{tpu_custom_call.1} parent=35 // pred_check_branch
            %204 = sbr.rel target = $region40
          $region39: #{tpu_custom_call.1} parent=35 // pred_region
            %205 = sst [smem:[#allocation11]] [#allocation10]
            %206 = sst [smem:[#allocation12]] [#allocation9]
          $region40: #{tpu_custom_call.1} parent=35 // pred_fallthru
            _
          %208 = shalt.err (0)
          %s210 = sshll.u32 %s200, 4
          %s211 = int_to_ptr.vmem [resolvable:$true] %s210
          %213 = dma.hbm_to_vmem [thread:$0]  %s196, 1024, %s211, %s202
          %s214 = smul.u32 %s188, 2
          %s215 = sadd.s32 %s214, %s193
          %s216 = smul.addr %s215, 64
          %s217 = scalar_lea.hbm %s0, %s216
          %s218 = smul.addr %s197, 8
          %s219 = scalar_lea.vmem [#allocation2], %s218
          %s220 = sadd.s32 1, %s201
          %s221 = scalar_lea.sflag [#allocation4], %s220
          // Predicated region
          $region41: #{tpu_custom_call.1} parent=35 // pred_check
            _
          $region42: #{tpu_custom_call.1} parent=35 // pred_check_branch
            %223 = sbr.rel target = $region44
          $region43: #{tpu_custom_call.1} parent=35 // pred_region
            %224 = sst [smem:[#allocation11]] [#allocation14]
            %225 = sst [smem:[#allocation12]] [#allocation13]
          $region44: #{tpu_custom_call.1} parent=35 // pred_fallthru
            _
          %227 = shalt.err (0)
          %s229 = sshll.u32 %s219, 4
          %s230 = int_to_ptr.vmem [resolvable:$true] %s229
          %232 = dma.hbm_to_vmem [thread:$0]  %s217, 128, %s230, %s221
          %s233 = smul.u32 %s191, 2
          %s234 = sadd.s32 %s233, %s193
          %s235 = smul.addr %s234, 64
          %s236 = scalar_lea.hbm %s0, %s235
          %s237 = sadd.s32 9, %s197
          %s238 = smul.addr %s237, 8
          %s239 = scalar_lea.vmem [#allocation2], %s238
          %s240 = sadd.s32 2, %s201
          %s241 = scalar_lea.sflag [#allocation4], %s240
          // Predicated region
          $region45: #{tpu_custom_call.1} parent=35 // pred_check
            _
          $region46: #{tpu_custom_call.1} parent=35 // pred_check_branch
            %243 = sbr.rel target = $region48
          $region47: #{tpu_custom_call.1} parent=35 // pred_region
            %244 = sst [smem:[#allocation11]] [#allocation16]
            %245 = sst [smem:[#allocation12]] [#allocation15]
          $region48: #{tpu_custom_call.1} parent=35 // pred_fallthru
            _
          %247 = shalt.err (0)
          %s249 = sshll.u32 %s239, 4
          %s250 = int_to_ptr.vmem [resolvable:$true] %s249
          %252 = dma.hbm_to_vmem [thread:$0]  %s236, 128, %s250, %s241
        $region36: #{tpu_custom_call.1} parent=27 // pred_fallthru
          _
        %s253 = smul.u32 %s180, 3
        %s254 = scalar_lea.sflag [#allocation4], %s253
        %s255 = smul.u32 4, 8
        %s256 = smul.u32 %s255, 2
        %s257 = smul.u32 %s256, 1
        %s258 = sshll.u32 %s257, 4
        %259 = dma.done %s254, %s258
        %s260 = sadd.s32 1, %s253
        %s261 = scalar_lea.sflag [#allocation4], %s260
        %s262 = smul.u32 4, 1
        %s263 = smul.u32 %s262, 2
        %s264 = smul.u32 %s263, 1
        %s265 = sshll.u32 %s264, 4
        %266 = dma.done %s261, %s265
        %s267 = sadd.s32 2, %s253
        %s268 = scalar_lea.sflag [#allocation4], %s267
        %s269 = sshll.u32 %s264, 4
        %270 = dma.done %s268, %s269
        %s271 = sadd.s32 %s25, 1
        %p272 = scmp.lt.s32.totalorder %s271, 2
        // Predicated region
        $region49: #{tpu_custom_call.1} parent=27 // pred_check
          %p273 = pneg %p272
        $region50: #{tpu_custom_call.1} parent=27 // pred_check_branch
          %275 = sbr.rel (%p273) target = $region52
        $region51: #{tpu_custom_call.1} parent=27 // pred_region
          %s276 = sadd.s32 %s168, 1
          %s277 = ssub.s32 1, %s180
          %s278 = smul.u32 %s276, 8
          %s279 = ssub.s32 %s278, 1
          %p280 = scmp.gt.s32.totalorder %s279, 0
          %s281 = scalar_select %p280, %s279, 0
          %s282 = sadd.s32 %s278, 8
          %p283 = scmp.lt.s32.totalorder %s282, 15
          %s284 = scalar_select %p283, %s282, 15
          %s285 = smul.u32 %s278, 2
          %s286 = smul.u32 %s23, 32
          %s287 = sadd.s32 %s285, %s286
          %s288 = smul.addr %s287, 64
          %s289 = scalar_lea.hbm %s0, %s288
          %s290 = smul.u32 %s277, 10
          %s291 = sadd.s32 1, %s290
          %s292 = smul.addr %s291, 8
          %s293 = scalar_lea.vmem [#allocation2], %s292
          %s294 = smul.u32 %s277, 3
          %s295 = scalar_lea.sflag [#allocation4], %s294
          // Predicated region
          $region53: #{tpu_custom_call.1} parent=51 // pred_check
            _
          $region54: #{tpu_custom_call.1} parent=51 // pred_check_branch
            %297 = sbr.rel target = $region56
          $region55: #{tpu_custom_call.1} parent=51 // pred_region
            %298 = sst [smem:[#allocation11]] [#allocation18]
            %299 = sst [smem:[#allocation12]] [#allocation17]
          $region56: #{tpu_custom_call.1} parent=51 // pred_fallthru
            _
          %301 = shalt.err (0)
          %s303 = sshll.u32 %s293, 4
          %s304 = int_to_ptr.vmem [resolvable:$true] %s303
          %306 = dma.hbm_to_vmem [thread:$0]  %s289, 1024, %s304, %s295
          %s307 = smul.u32 %s281, 2
          %s308 = sadd.s32 %s307, %s286
          %s309 = smul.addr %s308, 64
          %s310 = scalar_lea.hbm %s0, %s309
          %s311 = smul.addr %s290, 8
          %s312 = scalar_lea.vmem [#allocation2], %s311
          %s313 = sadd.s32 1, %s294
          %s314 = scalar_lea.sflag [#allocation4], %s313
          // Predicated region
          $region57: #{tpu_custom_call.1} parent=51 // pred_check
            _
          $region58: #{tpu_custom_call.1} parent=51 // pred_check_branch
            %316 = sbr.rel target = $region60
          $region59: #{tpu_custom_call.1} parent=51 // pred_region
            %317 = sst [smem:[#allocation11]] [#allocation20]
            %318 = sst [smem:[#allocation12]] [#allocation19]
          $region60: #{tpu_custom_call.1} parent=51 // pred_fallthru
            _
          %320 = shalt.err (0)
          %s322 = sshll.u32 %s312, 4
          %s323 = int_to_ptr.vmem [resolvable:$true] %s322
          %325 = dma.hbm_to_vmem [thread:$0]  %s310, 128, %s323, %s314
          %s326 = smul.u32 %s284, 2
          %s327 = sadd.s32 %s326, %s286
          %s328 = smul.addr %s327, 64
          %s329 = scalar_lea.hbm %s0, %s328
          %s330 = sadd.s32 9, %s290
          %s331 = smul.addr %s330, 8
          %s332 = scalar_lea.vmem [#allocation2], %s331
          %s333 = sadd.s32 2, %s294
          %s334 = scalar_lea.sflag [#allocation4], %s333
          // Predicated region
          $region61: #{tpu_custom_call.1} parent=51 // pred_check
            _
          $region62: #{tpu_custom_call.1} parent=51 // pred_check_branch
            %336 = sbr.rel target = $region64
          $region63: #{tpu_custom_call.1} parent=51 // pred_region
            %337 = sst [smem:[#allocation11]] [#allocation22]
            %338 = sst [smem:[#allocation12]] [#allocation21]
          $region64: #{tpu_custom_call.1} parent=51 // pred_fallthru
            _
          %340 = shalt.err (0)
          %s342 = sshll.u32 %s332, 4
          %s343 = int_to_ptr.vmem [resolvable:$true] %s342
          %345 = dma.hbm_to_vmem [thread:$0]  %s329, 128, %s343, %s334
        $region52: #{tpu_custom_call.1} parent=27 // pred_fallthru
          _
        %s346 = smul.u32 %s180, 10
        %s347 = smul.addr %s346, 8
        %s348 = scalar_lea.vmem [#allocation2], %s347
        %v349 = vld [vmem:[%s348] sm:$0xff]
        %v350 = vld [vmem:[%s348 + $0x8] sm:$0xff]
        %v351 = vld [vmem:[%s348 + $0x10] sm:$0xff]
        %v352 = vld [vmem:[%s348 + $0x18] sm:$0xff]
        %v353 = vld [vmem:[%s348 + $0x20] sm:$0xff]
        %v354 = vld [vmem:[%s348 + $0x28] sm:$0xff]
        %v355 = vld [vmem:[%s348 + $0x30] sm:$0xff]
        %v356 = vld [vmem:[%s348 + $0x38] sm:$0xff]
        %v357 = vld [vmem:[%s348 + $0x40] sm:$0xff]
        %v358 = vld [vmem:[%s348 + $0x48] sm:$0xff]
        %359 = vst [vmem:[#allocation3 + $0x8] sm:$0xff] %v349
        %360 = vst [vmem:[#allocation3 + $0x20] sm:$0xff] %v350
        %361 = vst [vmem:[#allocation3 + $0x38] sm:$0xff] %v351
        %362 = vst [vmem:[#allocation3 + $0x50] sm:$0xff] %v352
        %363 = vst [vmem:[#allocation3 + $0x68] sm:$0xff] %v353
        %364 = vst [vmem:[#allocation3 + $0x80] sm:$0xff] %v354
        %365 = vst [vmem:[#allocation3 + $0x98] sm:$0xff] %v355
        %366 = vst [vmem:[#allocation3 + $0xb0] sm:$0xff] %v356
        %367 = vst [vmem:[#allocation3 + $0xc8] sm:$0xff] %v357
        %368 = vst [vmem:[#allocation3 + $0xe0] sm:$0xff] %v358
        %vm369 = vcmask 1040384
        %vm370 = vsmask.f32 256
        %vm371 = vmand %vm369, %vm370
        %v372 = vld [vmem:[#allocation3] sm:$0x1]
        %v373 = vsel %vm371, 0, %v372
        %374 = vst [vmem:[#allocation3] sm:$0x1] %v373
        %v375 = vld [vmem:[#allocation3 + $0x18] sm:$0x1]
        %v376 = vsel %vm371, 0, %v375
        %377 = vst [vmem:[#allocation3 + $0x18] sm:$0x1] %v376
        %v378 = vld [vmem:[#allocation3 + $0x30] sm:$0x1]
        %v379 = vsel %vm371, 0, %v378
        %380 = vst [vmem:[#allocation3 + $0x30] sm:$0x1] %v379
        %v381 = vld [vmem:[#allocation3 + $0x48] sm:$0x1]
        %v382 = vsel %vm371, 0, %v381
        %383 = vst [vmem:[#allocation3 + $0x48] sm:$0x1] %v382
        %v384 = vld [vmem:[#allocation3 + $0x60] sm:$0x1]
        %v385 = vsel %vm371, 0, %v384
        %386 = vst [vmem:[#allocation3 + $0x60] sm:$0x1] %v385
        %v387 = vld [vmem:[#allocation3 + $0x78] sm:$0x1]
        %v388 = vsel %vm371, 0, %v387
        %389 = vst [vmem:[#allocation3 + $0x78] sm:$0x1] %v388
        %v390 = vld [vmem:[#allocation3 + $0x90] sm:$0x1]
        %v391 = vsel %vm371, 0, %v390
        %392 = vst [vmem:[#allocation3 + $0x90] sm:$0x1] %v391
        %v393 = vld [vmem:[#allocation3 + $0xa8] sm:$0x1]
        %v394 = vsel %vm371, 0, %v393
        %395 = vst [vmem:[#allocation3 + $0xa8] sm:$0x1] %v394
        %v396 = vld [vmem:[#allocation3 + $0xc0] sm:$0x1]
        %v397 = vsel %vm371, 0, %v396
        %398 = vst [vmem:[#allocation3 + $0xc0] sm:$0x1] %v397
        %v399 = vld [vmem:[#allocation3 + $0xd8] sm:$0x1]
        %v400 = vsel %vm371, 0, %v399
        %401 = vst [vmem:[#allocation3 + $0xd8] sm:$0x1] %v400
        %v403 = vshrl.u32 %v349, 16
        %v405 = vrot.slane %v403, 7
        %v406 = vshll.u32 %v349, 16
        %v408 = vor.u32 %v405, %v406
        %v410 = vshrl.u32 %v350, 16
        %v412 = vrot.slane %v410, 7
        %v413 = vshll.u32 %v350, 16
        %v415 = vor.u32 %v412, %v413
        %v417 = vshrl.u32 %v351, 16
        %v419 = vrot.slane %v417, 7
        %v420 = vshll.u32 %v351, 16
        %v422 = vor.u32 %v419, %v420
        %v424 = vshrl.u32 %v352, 16
        %v426 = vrot.slane %v424, 7
        %v427 = vshll.u32 %v352, 16
        %v429 = vor.u32 %v426, %v427
        %v431 = vshrl.u32 %v353, 16
        %v433 = vrot.slane %v431, 7
        %v434 = vshll.u32 %v353, 16
        %v436 = vor.u32 %v433, %v434
        %v438 = vshrl.u32 %v354, 16
        %v440 = vrot.slane %v438, 7
        %v441 = vshll.u32 %v354, 16
        %v443 = vor.u32 %v440, %v441
        %v445 = vshrl.u32 %v355, 16
        %v447 = vrot.slane %v445, 7
        %v448 = vshll.u32 %v355, 16
        %v450 = vor.u32 %v447, %v448
        %v452 = vshrl.u32 %v356, 16
        %v454 = vrot.slane %v452, 7
        %v455 = vshll.u32 %v356, 16
        %v457 = vor.u32 %v454, %v455
        %v459 = vshrl.u32 %v357, 16
        %v461 = vrot.slane %v459, 7
        %v462 = vshll.u32 %v357, 16
        %v464 = vor.u32 %v461, %v462
        %v466 = vshrl.u32 %v358, 16
        %v468 = vrot.slane %v466, 7
        %v469 = vshll.u32 %v358, 16
        %v471 = vor.u32 %v468, %v469
        %vm482 = vcmask 1047552
        %vm483 = vsmask.f32 7938
        %vm484 = vmand %vm482, %vm483
        %v485 = vld [vmem:[#allocation3] sm:$0xff]
        %v486 = vsel %vm484, %v408, %v485
        %487 = vst [vmem:[#allocation3] sm:$0xff] %v486
        %v488 = vld [vmem:[#allocation3 + $0x18] sm:$0xff]
        %v489 = vsel %vm484, %v415, %v488
        %490 = vst [vmem:[#allocation3 + $0x18] sm:$0xff] %v489
        %v491 = vld [vmem:[#allocation3 + $0x30] sm:$0xff]
        %v492 = vsel %vm484, %v422, %v491
        %493 = vst [vmem:[#allocation3 + $0x30] sm:$0xff] %v492
        %v494 = vld [vmem:[#allocation3 + $0x48] sm:$0xff]
        %v495 = vsel %vm484, %v429, %v494
        %496 = vst [vmem:[#allocation3 + $0x48] sm:$0xff] %v495
        %v497 = vld [vmem:[#allocation3 + $0x60] sm:$0xff]
        %v498 = vsel %vm484, %v436, %v497
        %499 = vst [vmem:[#allocation3 + $0x60] sm:$0xff] %v498
        %v500 = vld [vmem:[#allocation3 + $0x78] sm:$0xff]
        %v501 = vsel %vm484, %v443, %v500
        %502 = vst [vmem:[#allocation3 + $0x78] sm:$0xff] %v501
        %v503 = vld [vmem:[#allocation3 + $0x90] sm:$0xff]
        %v504 = vsel %vm484, %v450, %v503
        %505 = vst [vmem:[#allocation3 + $0x90] sm:$0xff] %v504
        %v506 = vld [vmem:[#allocation3 + $0xa8] sm:$0xff]
        %v507 = vsel %vm484, %v457, %v506
        %508 = vst [vmem:[#allocation3 + $0xa8] sm:$0xff] %v507
        %v509 = vld [vmem:[#allocation3 + $0xc0] sm:$0xff]
        %v510 = vsel %vm484, %v464, %v509
        %511 = vst [vmem:[#allocation3 + $0xc0] sm:$0xff] %v510
        %v512 = vld [vmem:[#allocation3 + $0xd8] sm:$0xff]
        %v513 = vsel %vm484, %v471, %v512
        %514 = vst [vmem:[#allocation3 + $0xd8] sm:$0xff] %v513
        %v515 = vrot.slane %v406, 1
        %v516 = vor.u32 %v403, %v515
        %v517 = vrot.slane %v413, 1
        %v518 = vor.u32 %v410, %v517
        %v519 = vrot.slane %v420, 1
        %v520 = vor.u32 %v417, %v519
        %v521 = vrot.slane %v427, 1
        %v522 = vor.u32 %v424, %v521
        %v523 = vrot.slane %v434, 1
        %v524 = vor.u32 %v431, %v523
        %v525 = vrot.slane %v441, 1
        %v526 = vor.u32 %v438, %v525
        %v527 = vrot.slane %v448, 1
        %v528 = vor.u32 %v445, %v527
        %v529 = vrot.slane %v455, 1
        %v530 = vor.u32 %v452, %v529
        %v531 = vrot.slane %v462, 1
        %v532 = vor.u32 %v459, %v531
        %v533 = vrot.slane %v469, 1
        %v534 = vor.u32 %v466, %v533
        %vm545 = vsmask.f32 7424
        %vm546 = vmand %vm482, %vm545
        %v547 = vld [vmem:[#allocation3 + $0x10] sm:$0xff]
        %v548 = vsel %vm546, %v516, %v547
        %549 = vst [vmem:[#allocation3 + $0x10] sm:$0xff] %v548
        %v550 = vld [vmem:[#allocation3 + $0x28] sm:$0xff]
        %v551 = vsel %vm546, %v518, %v550
        %552 = vst [vmem:[#allocation3 + $0x28] sm:$0xff] %v551
        %v553 = vld [vmem:[#allocation3 + $0x40] sm:$0xff]
        %v554 = vsel %vm546, %v520, %v553
        %555 = vst [vmem:[#allocation3 + $0x40] sm:$0xff] %v554
        %v556 = vld [vmem:[#allocation3 + $0x58] sm:$0xff]
        %v557 = vsel %vm546, %v522, %v556
        %558 = vst [vmem:[#allocation3 + $0x58] sm:$0xff] %v557
        %v559 = vld [vmem:[#allocation3 + $0x70] sm:$0xff]
        %v560 = vsel %vm546, %v524, %v559
        %561 = vst [vmem:[#allocation3 + $0x70] sm:$0xff] %v560
        %v562 = vld [vmem:[#allocation3 + $0x88] sm:$0xff]
        %v563 = vsel %vm546, %v526, %v562
        %564 = vst [vmem:[#allocation3 + $0x88] sm:$0xff] %v563
        %v565 = vld [vmem:[#allocation3 + $0xa0] sm:$0xff]
        %v566 = vsel %vm546, %v528, %v565
        %567 = vst [vmem:[#allocation3 + $0xa0] sm:$0xff] %v566
        %v568 = vld [vmem:[#allocation3 + $0xb8] sm:$0xff]
        %v569 = vsel %vm546, %v530, %v568
        %570 = vst [vmem:[#allocation3 + $0xb8] sm:$0xff] %v569
        %v571 = vld [vmem:[#allocation3 + $0xd0] sm:$0xff]
        %v572 = vsel %vm546, %v532, %v571
        %573 = vst [vmem:[#allocation3 + $0xd0] sm:$0xff] %v572
        %v574 = vld [vmem:[#allocation3 + $0xe8] sm:$0xff]
        %v575 = vsel %vm546, %v534, %v574
        %576 = vst [vmem:[#allocation3 + $0xe8] sm:$0xff] %v575
        %vm577 = vcmask 1047559
        %vm578 = vsmask.f32 7966
        %vm579 = vmand %vm577, %vm578
        %v580 = vld [vmem:[#allocation3 + $0x10] sm:$0x80]
        %v581 = vsel %vm579, 0, %v580
        %582 = vst [vmem:[#allocation3 + $0x10] sm:$0x80] %v581
        %v583 = vld [vmem:[#allocation3 + $0x28] sm:$0x80]
        %v584 = vsel %vm579, 0, %v583
        %585 = vst [vmem:[#allocation3 + $0x28] sm:$0x80] %v584
        %v586 = vld [vmem:[#allocation3 + $0x40] sm:$0x80]
        %v587 = vsel %vm579, 0, %v586
        %588 = vst [vmem:[#allocation3 + $0x40] sm:$0x80] %v587
        %v589 = vld [vmem:[#allocation3 + $0x58] sm:$0x80]
        %v590 = vsel %vm579, 0, %v589
        %591 = vst [vmem:[#allocation3 + $0x58] sm:$0x80] %v590
        %v592 = vld [vmem:[#allocation3 + $0x70] sm:$0x80]
        %v593 = vsel %vm579, 0, %v592
        %594 = vst [vmem:[#allocation3 + $0x70] sm:$0x80] %v593
        %v595 = vld [vmem:[#allocation3 + $0x88] sm:$0x80]
        %v596 = vsel %vm579, 0, %v595
        %597 = vst [vmem:[#allocation3 + $0x88] sm:$0x80] %v596
        %v598 = vld [vmem:[#allocation3 + $0xa0] sm:$0x80]
        %v599 = vsel %vm579, 0, %v598
        %600 = vst [vmem:[#allocation3 + $0xa0] sm:$0x80] %v599
        %v601 = vld [vmem:[#allocation3 + $0xb8] sm:$0x80]
        %v602 = vsel %vm579, 0, %v601
        %603 = vst [vmem:[#allocation3 + $0xb8] sm:$0x80] %v602
        %v604 = vld [vmem:[#allocation3 + $0xd0] sm:$0x80]
        %v605 = vsel %vm579, 0, %v604
        %606 = vst [vmem:[#allocation3 + $0xd0] sm:$0x80] %v605
        %v607 = vld [vmem:[#allocation3 + $0xe8] sm:$0x80]
        %v608 = vsel %vm579, 0, %v607
        %609 = vst [vmem:[#allocation3 + $0xe8] sm:$0x80] %v608
        %p610 = scmp.eq.s32.totalorder %s168, 0
        // Predicated region
        $region65: #{tpu_custom_call.1} parent=27 // pred_check
          %p611 = pneg %p610
        $region66: #{tpu_custom_call.1} parent=27 // pred_check_branch
          %613 = sbr.rel (%p611) target = $region68
        $region67: #{tpu_custom_call.1} parent=27 // pred_region
          %614 = vst [vmem:[#allocation3] sm:$0xff] 0
          %615 = vst [vmem:[#allocation3 + $0x8] sm:$0xff] 0
          %616 = vst [vmem:[#allocation3 + $0x10] sm:$0xff] 0
        $region68: #{tpu_custom_call.1} parent=27 // pred_fallthru
          _
        %p617 = scmp.eq.s32.totalorder %s168, 1
        // Predicated region
        $region69: #{tpu_custom_call.1} parent=27 // pred_check
          %p618 = pneg %p617
        $region70: #{tpu_custom_call.1} parent=27 // pred_check_branch
          %620 = sbr.rel (%p618) target = $region72
        $region71: #{tpu_custom_call.1} parent=27 // pred_region
          %s621 = scalar_lea.vmem [#allocation3], 216
          %622 = vst [vmem:[%s621] sm:$0xff] 0
          %623 = vst [vmem:[%s621 + $0x8] sm:$0xff] 0
          %624 = vst [vmem:[%s621 + $0x10] sm:$0xff] 0
        $region72: #{tpu_custom_call.1} parent=27 // pred_fallthru
          _
        %v625 = vld [vmem:[#allocation3] sm:$0xff]
        %v626 = vld [vmem:[#allocation3 + $0x8] sm:$0xff]
        %v627 = vld [vmem:[#allocation3 + $0x10] sm:$0xff]
        %v628 = vld [vmem:[#allocation3 + $0x18] sm:$0xff]
        %v629 = vld [vmem:[#allocation3 + $0x20] sm:$0xff]
        %v630 = vld [vmem:[#allocation3 + $0x28] sm:$0xff]
        %v631 = vld [vmem:[#allocation3 + $0x30] sm:$0xff]
        %v632 = vld [vmem:[#allocation3 + $0x38] sm:$0xff]
        %v633 = vld [vmem:[#allocation3 + $0x40] sm:$0xff]
        %v634 = vld [vmem:[#allocation3 + $0x48] sm:$0xff]
        %v635 = vld [vmem:[#allocation3 + $0x50] sm:$0xff]
        %v636 = vld [vmem:[#allocation3 + $0x58] sm:$0xff]
        %v637 = vld [vmem:[#allocation3 + $0x60] sm:$0xff]
        %v638 = vld [vmem:[#allocation3 + $0x68] sm:$0xff]
        %v639 = vld [vmem:[#allocation3 + $0x70] sm:$0xff]
        %v640 = vld [vmem:[#allocation3 + $0x78] sm:$0xff]
        %v641 = vld [vmem:[#allocation3 + $0x80] sm:$0xff]
        %v642 = vld [vmem:[#allocation3 + $0x88] sm:$0xff]
        %v643 = vld [vmem:[#allocation3 + $0x90] sm:$0xff]
        %v644 = vld [vmem:[#allocation3 + $0x98] sm:$0xff]
        %v645 = vld [vmem:[#allocation3 + $0xa0] sm:$0xff]
        %v646 = vld [vmem:[#allocation3 + $0xa8] sm:$0xff]
        %v647 = vld [vmem:[#allocation3 + $0xb0] sm:$0xff]
        %v648 = vld [vmem:[#allocation3 + $0xb8] sm:$0xff]
        %v649 = vld [vmem:[#allocation5] sm:$0xf]
        %v650 = vld [vmem:[#allocation5 + $0x4] sm:$0xf]
        %v651 = vld [vmem:[#allocation5 + $0x8] sm:$0xf]
        %v652 = vld [vmem:[#allocation5 + $0xc] sm:$0xf]
        %v653 = vld [vmem:[#allocation5 + $0x10] sm:$0xf]
        %v654 = vld [vmem:[#allocation5 + $0x14] sm:$0xf]
        %v655 = vld [vmem:[#allocation5 + $0x18] sm:$0xf]
        %v656 = vld [vmem:[#allocation5 + $0x1c] sm:$0xf]
        %v657 = vld [vmem:[#allocation5 + $0x20] sm:$0xf]
        %v658 = vld [vmem:[#allocation5 + $0x24] sm:$0xf]
        %v659 = vld [vmem:[#allocation5 + $0x28] sm:$0xf]
        %v660 = vld [vmem:[#allocation5 + $0x2c] sm:$0xf]
        %v661 = vld [vmem:[#allocation5 + $0x30] sm:$0xf]
        %v662 = vld [vmem:[#allocation5 + $0x34] sm:$0xf]
        %v663 = vld [vmem:[#allocation5 + $0x38] sm:$0xf]
        %v664 = vld [vmem:[#allocation5 + $0x3c] sm:$0xf]
        %v665 = vld [vmem:[#allocation5 + $0x40] sm:$0xf]
        %v666 = vld [vmem:[#allocation5 + $0x44] sm:$0xf]
        %v667 = vld [vmem:[#allocation5 + $0x48] sm:$0xf]
        %v668 = vld [vmem:[#allocation5 + $0x4c] sm:$0xf]
        %v669 = vld [vmem:[#allocation5 + $0x50] sm:$0xf]
        %v670 = vld [vmem:[#allocation5 + $0x54] sm:$0xf]
        %v671 = vld [vmem:[#allocation5 + $0x58] sm:$0xf]
        %v672 = vld [vmem:[#allocation5 + $0x5c] sm:$0xf]
        %v673 = vld [vmem:[#allocation5 + $0x60] sm:$0xf]
        %v674 = vld [vmem:[#allocation5 + $0x64] sm:$0xf]
        %v675 = vld [vmem:[#allocation5 + $0x68] sm:$0xf]
        %v676 = vld [vmem:[#allocation5 + $0x6c] sm:$0xf]
        %v677 = vld [vmem:[#allocation5 + $0x70] sm:$0xf]
        %v678 = vld [vmem:[#allocation5 + $0x74] sm:$0xf]
        %v679 = vld [vmem:[#allocation5 + $0x78] sm:$0xf]
        %v680 = vld [vmem:[#allocation5 + $0x7c] sm:$0xf]
        %v681 = vld [vmem:[#allocation5 + $0x80] sm:$0xf]
        %v682 = vld [vmem:[#allocation5 + $0x84] sm:$0xf]
        %v683 = vld [vmem:[#allocation5 + $0x88] sm:$0xf]
        %v684 = vld [vmem:[#allocation5 + $0x8c] sm:$0xf]
        %v685 = vld [vmem:[#allocation5 + $0x90] sm:$0xf]
        %v686 = vld [vmem:[#allocation5 + $0x94] sm:$0xf]
        %v687 = vld [vmem:[#allocation5 + $0x98] sm:$0xf]
        %v688 = vld [vmem:[#allocation5 + $0x9c] sm:$0xf]
        %v689 = vld [vmem:[#allocation5 + $0xa0] sm:$0xf]
        %v690 = vld [vmem:[#allocation5 + $0xa4] sm:$0xf]
        %v691 = vld [vmem:[#allocation5 + $0xa8] sm:$0xf]
        %v692 = vld [vmem:[#allocation5 + $0xac] sm:$0xf]
        %v693 = vld [vmem:[#allocation5 + $0xb0] sm:$0xf]
        %v694 = vld [vmem:[#allocation5 + $0xb4] sm:$0xf]
        %v695 = vld [vmem:[#allocation5 + $0xb8] sm:$0xf]
        %v696 = vld [vmem:[#allocation5 + $0xbc] sm:$0xf]
        %s697 = scalar_lea.vmem [#allocation3], 24
        %v698 = vld [vmem:[%s697] sm:$0xff]
        %v699 = vld [vmem:[%s697 + $0x8] sm:$0xff]
        %v700 = vld [vmem:[%s697 + $0x10] sm:$0xff]
        %v701 = vld [vmem:[%s697 + $0x18] sm:$0xff]
        %v702 = vld [vmem:[%s697 + $0x20] sm:$0xff]
        %v703 = vld [vmem:[%s697 + $0x28] sm:$0xff]
        %v704 = vld [vmem:[%s697 + $0x30] sm:$0xff]
        %v705 = vld [vmem:[%s697 + $0x38] sm:$0xff]
        %v706 = vld [vmem:[%s697 + $0x40] sm:$0xff]
        %v707 = vld [vmem:[%s697 + $0x48] sm:$0xff]
        %v708 = vld [vmem:[%s697 + $0x50] sm:$0xff]
        %v709 = vld [vmem:[%s697 + $0x58] sm:$0xff]
        %v710 = vld [vmem:[%s697 + $0x60] sm:$0xff]
        %v711 = vld [vmem:[%s697 + $0x68] sm:$0xff]
        %v712 = vld [vmem:[%s697 + $0x70] sm:$0xff]
        %v713 = vld [vmem:[%s697 + $0x78] sm:$0xff]
        %v714 = vld [vmem:[%s697 + $0x80] sm:$0xff]
        %v715 = vld [vmem:[%s697 + $0x88] sm:$0xff]
        %v716 = vld [vmem:[%s697 + $0x90] sm:$0xff]
        %v717 = vld [vmem:[%s697 + $0x98] sm:$0xff]
        %v718 = vld [vmem:[%s697 + $0xa0] sm:$0xff]
        %v719 = vld [vmem:[%s697 + $0xa8] sm:$0xff]
        %v720 = vld [vmem:[%s697 + $0xb0] sm:$0xff]
        %v721 = vld [vmem:[%s697 + $0xb8] sm:$0xff]
        %s722 = scalar_lea.vmem [#allocation5], 192
        %v723 = vld [vmem:[%s722] sm:$0xf]
        %v724 = vld [vmem:[%s722 + $0x4] sm:$0xf]
        %v725 = vld [vmem:[%s722 + $0x8] sm:$0xf]
        %v726 = vld [vmem:[%s722 + $0xc] sm:$0xf]
        %v727 = vld [vmem:[%s722 + $0x10] sm:$0xf]
        %v728 = vld [vmem:[%s722 + $0x14] sm:$0xf]
        %v729 = vld [vmem:[%s722 + $0x18] sm:$0xf]
        %v730 = vld [vmem:[%s722 + $0x1c] sm:$0xf]
        %v731 = vld [vmem:[%s722 + $0x20] sm:$0xf]
        %v732 = vld [vmem:[%s722 + $0x24] sm:$0xf]
        %v733 = vld [vmem:[%s722 + $0x28] sm:$0xf]
        %v734 = vld [vmem:[%s722 + $0x2c] sm:$0xf]
        %v735 = vld [vmem:[%s722 + $0x30] sm:$0xf]
        %v736 = vld [vmem:[%s722 + $0x34] sm:$0xf]
        %v737 = vld [vmem:[%s722 + $0x38] sm:$0xf]
        %v738 = vld [vmem:[%s722 + $0x3c] sm:$0xf]
        %v739 = vld [vmem:[%s722 + $0x40] sm:$0xf]
        %v740 = vld [vmem:[%s722 + $0x44] sm:$0xf]
        %v741 = vld [vmem:[%s722 + $0x48] sm:$0xf]
        %v742 = vld [vmem:[%s722 + $0x4c] sm:$0xf]
        %v743 = vld [vmem:[%s722 + $0x50] sm:$0xf]
        %v744 = vld [vmem:[%s722 + $0x54] sm:$0xf]
        %v745 = vld [vmem:[%s722 + $0x58] sm:$0xf]
        %v746 = vld [vmem:[%s722 + $0x5c] sm:$0xf]
        %v747 = vld [vmem:[%s722 + $0x60] sm:$0xf]
        %v748 = vld [vmem:[%s722 + $0x64] sm:$0xf]
        %v749 = vld [vmem:[%s722 + $0x68] sm:$0xf]
        %v750 = vld [vmem:[%s722 + $0x6c] sm:$0xf]
        %v751 = vld [vmem:[%s722 + $0x70] sm:$0xf]
        %v752 = vld [vmem:[%s722 + $0x74] sm:$0xf]
        %v753 = vld [vmem:[%s722 + $0x78] sm:$0xf]
        %v754 = vld [vmem:[%s722 + $0x7c] sm:$0xf]
        %v755 = vld [vmem:[%s722 + $0x80] sm:$0xf]
        %v756 = vld [vmem:[%s722 + $0x84] sm:$0xf]
        %v757 = vld [vmem:[%s722 + $0x88] sm:$0xf]
        %v758 = vld [vmem:[%s722 + $0x8c] sm:$0xf]
        %v759 = vld [vmem:[%s722 + $0x90] sm:$0xf]
        %v760 = vld [vmem:[%s722 + $0x94] sm:$0xf]
        %v761 = vld [vmem:[%s722 + $0x98] sm:$0xf]
        %v762 = vld [vmem:[%s722 + $0x9c] sm:$0xf]
        %v763 = vld [vmem:[%s722 + $0xa0] sm:$0xf]
        %v764 = vld [vmem:[%s722 + $0xa4] sm:$0xf]
        %v765 = vld [vmem:[%s722 + $0xa8] sm:$0xf]
        %v766 = vld [vmem:[%s722 + $0xac] sm:$0xf]
        %v767 = vld [vmem:[%s722 + $0xb0] sm:$0xf]
        %v768 = vld [vmem:[%s722 + $0xb4] sm:$0xf]
        %v769 = vld [vmem:[%s722 + $0xb8] sm:$0xf]
        %v770 = vld [vmem:[%s722 + $0xbc] sm:$0xf]
        %v819 = vunpack.c.l.b16 %v723
        %v820 = vunpack.c.l.b16 %v724
        %v821 = vunpack.c.l.b16 %v725
        %v822 = vunpack.c.l.b16 %v726
        %v823 = vunpack.c.l.b16 %v727
        %v824 = vunpack.c.l.b16 %v728
        %v825 = vunpack.c.l.b16 %v729
        %v826 = vunpack.c.l.b16 %v730
        %v827 = vunpack.c.l.b16 %v731
        %v828 = vunpack.c.l.b16 %v732
        %v829 = vunpack.c.l.b16 %v733
        %v830 = vunpack.c.l.b16 %v734
        %v831 = vunpack.c.l.b16 %v735
        %v832 = vunpack.c.l.b16 %v736
        %v833 = vunpack.c.l.b16 %v737
        %v834 = vunpack.c.l.b16 %v738
        %v835 = vunpack.c.l.b16 %v739
        %v836 = vunpack.c.l.b16 %v740
        %v837 = vunpack.c.l.b16 %v741
        %v838 = vunpack.c.l.b16 %v742
        %v839 = vunpack.c.l.b16 %v743
        %v840 = vunpack.c.l.b16 %v744
        %v841 = vunpack.c.l.b16 %v745
        %v842 = vunpack.c.l.b16 %v746
        %v843 = vunpack.c.l.b16 %v747
        %v844 = vunpack.c.l.b16 %v748
        %v845 = vunpack.c.l.b16 %v749
        %v846 = vunpack.c.l.b16 %v750
        %v847 = vunpack.c.l.b16 %v751
        %v848 = vunpack.c.l.b16 %v752
        %v849 = vunpack.c.l.b16 %v753
        %v850 = vunpack.c.l.b16 %v754
        %v851 = vunpack.c.l.b16 %v755
        %v852 = vunpack.c.l.b16 %v756
        %v853 = vunpack.c.l.b16 %v757
        %v854 = vunpack.c.l.b16 %v758
        %v855 = vunpack.c.l.b16 %v759
        %v856 = vunpack.c.l.b16 %v760
        %v857 = vunpack.c.l.b16 %v761
        %v858 = vunpack.c.l.b16 %v762
        %v859 = vunpack.c.l.b16 %v763
        %v860 = vunpack.c.l.b16 %v764
        %v861 = vunpack.c.l.b16 %v765
        %v862 = vunpack.c.l.b16 %v766
        %v863 = vunpack.c.l.b16 %v767
        %v864 = vunpack.c.l.b16 %v768
        %v865 = vunpack.c.l.b16 %v769
        %v866 = vunpack.c.l.b16 %v770
        %v867 = vpack.c.b16 %v820, %v819
        %v868 = vpack.c.b16 %v822, %v821
        %v869 = vpack.c.b16 %v824, %v823
        %v870 = vpack.c.b16 %v826, %v825
        %v871 = vpack.c.b16 %v828, %v827
        %v872 = vpack.c.b16 %v830, %v829
        %v873 = vpack.c.b16 %v832, %v831
        %v874 = vpack.c.b16 %v834, %v833
        %v875 = vpack.c.b16 %v836, %v835
        %v876 = vpack.c.b16 %v838, %v837
        %v877 = vpack.c.b16 %v840, %v839
        %v878 = vpack.c.b16 %v842, %v841
        %v879 = vpack.c.b16 %v844, %v843
        %v880 = vpack.c.b16 %v846, %v845
        %v881 = vpack.c.b16 %v848, %v847
        %v882 = vpack.c.b16 %v850, %v849
        %v883 = vpack.c.b16 %v852, %v851
        %v884 = vpack.c.b16 %v854, %v853
        %v885 = vpack.c.b16 %v856, %v855
        %v886 = vpack.c.b16 %v858, %v857
        %v887 = vpack.c.b16 %v860, %v859
        %v888 = vpack.c.b16 %v862, %v861
        %v889 = vpack.c.b16 %v864, %v863
        %v890 = vpack.c.b16 %v866, %v865
        %915 = vmatprep.subr.bf16.mxu0 0
        %916 = vmatpush1.bf16.msra.mxu0 %v867
        %917 = vmatprep.subr.bf16.mxu0 0
        %918 = vmatpush1.bf16.msra.mxu0 %v868
        %919 = vmatprep.subr.bf16.mxu0 0
        %920 = vmatpush1.bf16.msra.mxu0 %v869
        %921 = vmatprep.subr.bf16.mxu0 0
        %922 = vmatpush1.bf16.msra.mxu0 %v870
        %923 = vmatprep.subr.bf16.mxu0 0
        %924 = vmatpush1.bf16.msra.mxu0 %v871
        %925 = vmatprep.subr.bf16.mxu0 0
        %926 = vmatpush1.bf16.msra.mxu0 %v872
        %927 = vmatprep.subr.bf16.mxu0 0
        %928 = vmatpush1.bf16.msra.mxu0 %v873
        %929 = vmatprep.subr.bf16.mxu0 0
        %930 = vmatpush1.bf16.msra.mxu0 %v874
        %931 = vmatprep.subr.bf16.mxu0 0
        %932 = vmatpush1.bf16.msra.mxu0 %v875
        %933 = vmatprep.subr.bf16.mxu0 0
        %934 = vmatpush1.bf16.msra.mxu0 %v876
        %935 = vmatprep.subr.bf16.mxu0 0
        %936 = vmatpush1.bf16.msra.mxu0 %v877
        %937 = vmatprep.subr.bf16.mxu0 0
        %938 = vmatpush1.bf16.msra.mxu0 %v878
        %939 = vmatprep.subr.bf16.mxu0 0
        %940 = vmatpush1.bf16.msra.mxu0 %v879
        %941 = vmatprep.subr.bf16.mxu0 0
        %942 = vmatpush1.bf16.msra.mxu0 %v880
        %943 = vmatprep.subr.bf16.mxu0 0
        %944 = vmatpush1.bf16.msra.mxu0 %v881
        %945 = vmatprep.subr.bf16.mxu0 0
        %946 = vmatpush1.bf16.msra.mxu0 %v882
        %947 = vmatprep.mubr.bf16.mxu0 %v699
        %948 = vmatmul.mubr.bf16.gmra.mrb[0].mxu0 %v698
        %v949 = vpop.f32.mrb[0].mxu0
        %v950 = vadd.f32 0.0, %v949
        %v951 = vpop.f32.mrb[0].mxu0
        %v952 = vpop.f32.mrb[0].mxu0
        %v953 = vadd.f32 0.0, %v952
        %v954 = vpop.f32.mrb[0].mxu0
        %955 = vmatprep.mubr.bf16.mxu0 %v702
        %956 = vmatmul.mubr.bf16.gmra.mrb[0].mxu0 %v701
        %v957 = vpop.f32.mrb[0].mxu0
        %v958 = vadd.f32 0.0, %v957
        %v959 = vpop.f32.mrb[0].mxu0
        %v960 = vpop.f32.mrb[0].mxu0
        %v961 = vadd.f32 0.0, %v960
        %v962 = vpop.f32.mrb[0].mxu0
        %963 = vmatprep.mubr.bf16.mxu0 %v705
        %964 = vmatmul.mubr.bf16.gmra.mrb[0].mxu0 %v704
        %v965 = vpop.f32.mrb[0].mxu0
        %v966 = vadd.f32 0.0, %v965
        %v967 = vpop.f32.mrb[0].mxu0
        %v968 = vpop.f32.mrb[0].mxu0
        %v969 = vadd.f32 0.0, %v968
        %v970 = vpop.f32.mrb[0].mxu0
        %971 = vmatprep.mubr.bf16.mxu0 %v708
        %972 = vmatmul.mubr.bf16.gmra.mrb[0].mxu0 %v707
        %v973 = vpop.f32.mrb[0].mxu0
        %v974 = vadd.f32 0.0, %v973
        %v975 = vpop.f32.mrb[0].mxu0
        %v976 = vpop.f32.mrb[0].mxu0
        %v977 = vadd.f32 0.0, %v976
        %v978 = vpop.f32.mrb[0].mxu0
        %979 = vmatprep.mubr.bf16.mxu0 %v711
        %980 = vmatmul.mubr.bf16.gmra.mrb[0].mxu0 %v710
        %v981 = vpop.f32.mrb[0].mxu0
        %v982 = vadd.f32 0.0, %v981
        %v983 = vpop.f32.mrb[0].mxu0
        %v984 = vpop.f32.mrb[0].mxu0
        %v985 = vadd.f32 0.0, %v984
        %v986 = vpop.f32.mrb[0].mxu0
        %987 = vmatprep.mubr.bf16.mxu0 %v714
        %988 = vmatmul.mubr.bf16.gmra.mrb[0].mxu0 %v713
        %v989 = vpop.f32.mrb[0].mxu0
        %v990 = vadd.f32 0.0, %v989
        %v991 = vpop.f32.mrb[0].mxu0
        %v992 = vpop.f32.mrb[0].mxu0
        %v993 = vadd.f32 0.0, %v992
        %v994 = vpop.f32.mrb[0].mxu0
        %995 = vmatprep.mubr.bf16.mxu0 %v717
        %996 = vmatmul.mubr.bf16.gmra.mrb[0].mxu0 %v716
        %v997 = vpop.f32.mrb[0].mxu0
        %v998 = vadd.f32 0.0, %v997
        %v999 = vpop.f32.mrb[0].mxu0
        %v1000 = vpop.f32.mrb[0].mxu0
        %v1001 = vadd.f32 0.0, %v1000
        %v1002 = vpop.f32.mrb[0].mxu0
        %1003 = vmatprep.mubr.bf16.mxu0 %v720
        %1004 = vmatmul.mubr.bf16.gmra.mrb[0].mxu0 %v719
        %v1005 = vpop.f32.mrb[0].mxu0
        %v1006 = vadd.f32 0.0, %v1005
        %v1007 = vpop.f32.mrb[0].mxu0
        %v1008 = vpop.f32.mrb[0].mxu0
        %v1009 = vadd.f32 0.0, %v1008
        %v1010 = vpop.f32.mrb[0].mxu0
        %1011 = vdwg.mxu0
        %1012 = vmatprep.subr.bf16.mxu0 0
        %1013 = vmatpush1.bf16.msra.mxu0 %v883
        %1014 = vmatprep.subr.bf16.mxu0 0
        %1015 = vmatpush1.bf16.msra.mxu0 %v884
        %1016 = vmatprep.subr.bf16.mxu0 0
        %1017 = vmatpush1.bf16.msra.mxu0 %v885
        %1018 = vmatprep.subr.bf16.mxu0 0
        %1019 = vmatpush1.bf16.msra.mxu0 %v886
        %1020 = vmatprep.subr.bf16.mxu0 0
        %1021 = vmatpush1.bf16.msra.mxu0 %v887
        %1022 = vmatprep.subr.bf16.mxu0 0
        %1023 = vmatpush1.bf16.msra.mxu0 %v888
        %1024 = vmatprep.subr.bf16.mxu0 0
        %1025 = vmatpush1.bf16.msra.mxu0 %v889
        %1026 = vmatprep.subr.bf16.mxu0 0
        %1027 = vmatpush1.bf16.msra.mxu0 %v890
        %1028 = vmatprep.subr.bf16.mxu0 0
        %1029 = vmatpush1.bf16.msra.mxu0 0
        %1030 = vmatprep.subr.bf16.mxu0 0
        %1031 = vmatpush1.bf16.msra.mxu0 0
        %1032 = vmatprep.subr.bf16.mxu0 0
        %1033 = vmatpush1.bf16.msra.mxu0 0
        %1034 = vmatprep.subr.bf16.mxu0 0
        %1035 = vmatpush1.bf16.msra.mxu0 0
        %1036 = vmatprep.subr.bf16.mxu0 0
        %1037 = vmatpush1.bf16.msra.mxu0 0
        %1038 = vmatprep.subr.bf16.mxu0 0
        %1039 = vmatpush1.bf16.msra.mxu0 0
        %1040 = vmatprep.subr.bf16.mxu0 0
        %1041 = vmatpush1.bf16.msra.mxu0 0
        %1042 = vmatprep.subr.bf16.mxu0 0
        %1043 = vmatpush1.bf16.msra.mxu0 0
        %1044 = vmatprep.mubr.bf16.mxu0 0
        %1045 = vmatmul.mubr.bf16.gmra.mrb[0].mxu0 %v700
        %v1046 = vpop.f32.mrb[0].mxu0
        %v1047 = vadd.f32 %v950, %v1046
        %v1048 = vpop.f32.mrb[0].mxu0
        %v1049 = vpop.f32.mrb[0].mxu0
        %v1050 = vadd.f32 %v953, %v1049
        %v1051 = vpop.f32.mrb[0].mxu0
        %1052 = vmatprep.mubr.bf16.mxu0 0
        %1053 = vmatmul.mubr.bf16.gmra.mrb[0].mxu0 %v703
        %v1054 = vpop.f32.mrb[0].mxu0
        %v1055 = vadd.f32 %v958, %v1054
        %v1056 = vpop.f32.mrb[0].mxu0
        %v1057 = vpop.f32.mrb[0].mxu0
        %v1058 = vadd.f32 %v961, %v1057
        %v1059 = vpop.f32.mrb[0].mxu0
        %1060 = vmatprep.mubr.bf16.mxu0 0
        %1061 = vmatmul.mubr.bf16.gmra.mrb[0].mxu0 %v706
        %v1062 = vpop.f32.mrb[0].mxu0
        %v1063 = vadd.f32 %v966, %v1062
        %v1064 = vpop.f32.mrb[0].mxu0
        %v1065 = vpop.f32.mrb[0].mxu0
        %v1066 = vadd.f32 %v969, %v1065
        %v1067 = vpop.f32.mrb[0].mxu0
        %1068 = vmatprep.mubr.bf16.mxu0 0
        %1069 = vmatmul.mubr.bf16.gmra.mrb[0].mxu0 %v709
        %v1070 = vpop.f32.mrb[0].mxu0
        %v1071 = vadd.f32 %v974, %v1070
        %v1072 = vpop.f32.mrb[0].mxu0
        %v1073 = vpop.f32.mrb[0].mxu0
        %v1074 = vadd.f32 %v977, %v1073
        %v1075 = vpop.f32.mrb[0].mxu0
        %1076 = vmatprep.mubr.bf16.mxu0 0
        %1077 = vmatmul.mubr.bf16.gmra.mrb[0].mxu0 %v712
        %v1078 = vpop.f32.mrb[0].mxu0
        %v1079 = vadd.f32 %v982, %v1078
        %v1080 = vpop.f32.mrb[0].mxu0
        %v1081 = vpop.f32.mrb[0].mxu0
        %v1082 = vadd.f32 %v985, %v1081
        %v1083 = vpop.f32.mrb[0].mxu0
        %1084 = vmatprep.mubr.bf16.mxu0 0
        %1085 = vmatmul.mubr.bf16.gmra.mrb[0].mxu0 %v715
        %v1086 = vpop.f32.mrb[0].mxu0
        %v1087 = vadd.f32 %v990, %v1086
        %v1088 = vpop.f32.mrb[0].mxu0
        %v1089 = vpop.f32.mrb[0].mxu0
        %v1090 = vadd.f32 %v993, %v1089
        %v1091 = vpop.f32.mrb[0].mxu0
        %1092 = vmatprep.mubr.bf16.mxu0 0
        %1093 = vmatmul.mubr.bf16.gmra.mrb[0].mxu0 %v718
        %v1094 = vpop.f32.mrb[0].mxu0
        %v1095 = vadd.f32 %v998, %v1094
        %v1096 = vpop.f32.mrb[0].mxu0
        %v1097 = vpop.f32.mrb[0].mxu0
        %v1098 = vadd.f32 %v1001, %v1097
        %v1099 = vpop.f32.mrb[0].mxu0
        %1100 = vmatprep.mubr.bf16.mxu0 0
        %1101 = vmatmul.mubr.bf16.gmra.mrb[0].mxu0 %v721
        %v1102 = vpop.f32.mrb[0].mxu0
        %v1103 = vadd.f32 %v1006, %v1102
        %v1104 = vpop.f32.mrb[0].mxu0
        %v1105 = vpop.f32.mrb[0].mxu0
        %v1106 = vadd.f32 %v1009, %v1105
        %v1107 = vpop.f32.mrb[0].mxu0
        %1108 = vdwg.mxu0
        %v1157 = vunpack.c.l.b16 %v649
        %v1158 = vunpack.c.l.b16 %v650
        %v1159 = vunpack.c.l.b16 %v651
        %v1160 = vunpack.c.l.b16 %v652
        %v1161 = vunpack.c.l.b16 %v653
        %v1162 = vunpack.c.l.b16 %v654
        %v1163 = vunpack.c.l.b16 %v655
        %v1164 = vunpack.c.l.b16 %v656
        %v1165 = vunpack.c.l.b16 %v657
        %v1166 = vunpack.c.l.b16 %v658
        %v1167 = vunpack.c.l.b16 %v659
        %v1168 = vunpack.c.l.b16 %v660
        %v1169 = vunpack.c.l.b16 %v661
        %v1170 = vunpack.c.l.b16 %v662
        %v1171 = vunpack.c.l.b16 %v663
        %v1172 = vunpack.c.l.b16 %v664
        %v1173 = vunpack.c.l.b16 %v665
        %v1174 = vunpack.c.l.b16 %v666
        %v1175 = vunpack.c.l.b16 %v667
        %v1176 = vunpack.c.l.b16 %v668
        %v1177 = vunpack.c.l.b16 %v669
        %v1178 = vunpack.c.l.b16 %v670
        %v1179 = vunpack.c.l.b16 %v671
        %v1180 = vunpack.c.l.b16 %v672
        %v1181 = vunpack.c.l.b16 %v673
        %v1182 = vunpack.c.l.b16 %v674
        %v1183 = vunpack.c.l.b16 %v675
        %v1184 = vunpack.c.l.b16 %v676
        %v1185 = vunpack.c.l.b16 %v677
        %v1186 = vunpack.c.l.b16 %v678
        %v1187 = vunpack.c.l.b16 %v679
        %v1188 = vunpack.c.l.b16 %v680
        %v1189 = vunpack.c.l.b16 %v681
        %v1190 = vunpack.c.l.b16 %v682
        %v1191 = vunpack.c.l.b16 %v683
        %v1192 = vunpack.c.l.b16 %v684
        %v1193 = vunpack.c.l.b16 %v685
        %v1194 = vunpack.c.l.b16 %v686
        %v1195 = vunpack.c.l.b16 %v687
        %v1196 = vunpack.c.l.b16 %v688
        %v1197 = vunpack.c.l.b16 %v689
        %v1198 = vunpack.c.l.b16 %v690
        %v1199 = vunpack.c.l.b16 %v691
        %v1200 = vunpack.c.l.b16 %v692
        %v1201 = vunpack.c.l.b16 %v693
        %v1202 = vunpack.c.l.b16 %v694
        %v1203 = vunpack.c.l.b16 %v695
        %v1204 = vunpack.c.l.b16 %v696
        %v1205 = vpack.c.b16 %v1158, %v1157
        %v1206 = vpack.c.b16 %v1160, %v1159
        %v1207 = vpack.c.b16 %v1162, %v1161
        %v1208 = vpack.c.b16 %v1164, %v1163
        %v1209 = vpack.c.b16 %v1166, %v1165
        %v1210 = vpack.c.b16 %v1168, %v1167
        %v1211 = vpack.c.b16 %v1170, %v1169
        %v1212 = vpack.c.b16 %v1172, %v1171
        %v1213 = vpack.c.b16 %v1174, %v1173
        %v1214 = vpack.c.b16 %v1176, %v1175
        %v1215 = vpack.c.b16 %v1178, %v1177
        %v1216 = vpack.c.b16 %v1180, %v1179
        %v1217 = vpack.c.b16 %v1182, %v1181
        %v1218 = vpack.c.b16 %v1184, %v1183
        %v1219 = vpack.c.b16 %v1186, %v1185
        %v1220 = vpack.c.b16 %v1188, %v1187
        %v1221 = vpack.c.b16 %v1190, %v1189
        %v1222 = vpack.c.b16 %v1192, %v1191
        %v1223 = vpack.c.b16 %v1194, %v1193
        %v1224 = vpack.c.b16 %v1196, %v1195
        %v1225 = vpack.c.b16 %v1198, %v1197
        %v1226 = vpack.c.b16 %v1200, %v1199
        %v1227 = vpack.c.b16 %v1202, %v1201
        %v1228 = vpack.c.b16 %v1204, %v1203
        %1253 = vmatprep.subr.bf16.mxu0 0
        %1254 = vmatpush1.bf16.msra.mxu0 %v1205
        %1255 = vmatprep.subr.bf16.mxu0 0
        %1256 = vmatpush1.bf16.msra.mxu0 %v1206
        %1257 = vmatprep.subr.bf16.mxu0 0
        %1258 = vmatpush1.bf16.msra.mxu0 %v1207
        %1259 = vmatprep.subr.bf16.mxu0 0
        %1260 = vmatpush1.bf16.msra.mxu0 %v1208
        %1261 = vmatprep.subr.bf16.mxu0 0
        %1262 = vmatpush1.bf16.msra.mxu0 %v1209
        %1263 = vmatprep.subr.bf16.mxu0 0
        %1264 = vmatpush1.bf16.msra.mxu0 %v1210
        %1265 = vmatprep.subr.bf16.mxu0 0
        %1266 = vmatpush1.bf16.msra.mxu0 %v1211
        %1267 = vmatprep.subr.bf16.mxu0 0
        %1268 = vmatpush1.bf16.msra.mxu0 %v1212
        %1269 = vmatprep.subr.bf16.mxu0 0
        %1270 = vmatpush1.bf16.msra.mxu0 %v1213
        %1271 = vmatprep.subr.bf16.mxu0 0
        %1272 = vmatpush1.bf16.msra.mxu0 %v1214
        %1273 = vmatprep.subr.bf16.mxu0 0
        %1274 = vmatpush1.bf16.msra.mxu0 %v1215
        %1275 = vmatprep.subr.bf16.mxu0 0
        %1276 = vmatpush1.bf16.msra.mxu0 %v1216
        %1277 = vmatprep.subr.bf16.mxu0 0
        %1278 = vmatpush1.bf16.msra.mxu0 %v1217
        %1279 = vmatprep.subr.bf16.mxu0 0
        %1280 = vmatpush1.bf16.msra.mxu0 %v1218
        %1281 = vmatprep.subr.bf16.mxu0 0
        %1282 = vmatpush1.bf16.msra.mxu0 %v1219
        %1283 = vmatprep.subr.bf16.mxu0 0
        %1284 = vmatpush1.bf16.msra.mxu0 %v1220
        %1285 = vmatprep.mubr.bf16.mxu0 %v626
        %1286 = vmatmul.mubr.bf16.gmra.mrb[0].mxu0 %v625
        %v1287 = vpop.f32.mrb[0].mxu0
        %v1288 = vadd.f32 %v1047, %v1287
        %v1289 = vpop.f32.mrb[0].mxu0
        %v1290 = vpop.f32.mrb[0].mxu0
        %v1291 = vadd.f32 %v1050, %v1290
        %v1292 = vpop.f32.mrb[0].mxu0
        %1293 = vmatprep.mubr.bf16.mxu0 %v629
        %1294 = vmatmul.mubr.bf16.gmra.mrb[0].mxu0 %v628
        %v1295 = vpop.f32.mrb[0].mxu0
        %v1296 = vadd.f32 %v1055, %v1295
        %v1297 = vpop.f32.mrb[0].mxu0
        %v1298 = vpop.f32.mrb[0].mxu0
        %v1299 = vadd.f32 %v1058, %v1298
        %v1300 = vpop.f32.mrb[0].mxu0
        %1301 = vmatprep.mubr.bf16.mxu0 %v632
        %1302 = vmatmul.mubr.bf16.gmra.mrb[0].mxu0 %v631
        %v1303 = vpop.f32.mrb[0].mxu0
        %v1304 = vadd.f32 %v1063, %v1303
        %v1305 = vpop.f32.mrb[0].mxu0
        %v1306 = vpop.f32.mrb[0].mxu0
        %v1307 = vadd.f32 %v1066, %v1306
        %v1308 = vpop.f32.mrb[0].mxu0
        %1309 = vmatprep.mubr.bf16.mxu0 %v635
        %1310 = vmatmul.mubr.bf16.gmra.mrb[0].mxu0 %v634
        %v1311 = vpop.f32.mrb[0].mxu0
        %v1312 = vadd.f32 %v1071, %v1311
        %v1313 = vpop.f32.mrb[0].mxu0
        %v1314 = vpop.f32.mrb[0].mxu0
        %v1315 = vadd.f32 %v1074, %v1314
        %v1316 = vpop.f32.mrb[0].mxu0
        %1317 = vmatprep.mubr.bf16.mxu0 %v638
        %1318 = vmatmul.mubr.bf16.gmra.mrb[0].mxu0 %v637
        %v1319 = vpop.f32.mrb[0].mxu0
        %v1320 = vadd.f32 %v1079, %v1319
        %v1321 = vpop.f32.mrb[0].mxu0
        %v1322 = vpop.f32.mrb[0].mxu0
        %v1323 = vadd.f32 %v1082, %v1322
        %v1324 = vpop.f32.mrb[0].mxu0
        %1325 = vmatprep.mubr.bf16.mxu0 %v641
        %1326 = vmatmul.mubr.bf16.gmra.mrb[0].mxu0 %v640
        %v1327 = vpop.f32.mrb[0].mxu0
        %v1328 = vadd.f32 %v1087, %v1327
        %v1329 = vpop.f32.mrb[0].mxu0
        %v1330 = vpop.f32.mrb[0].mxu0
        %v1331 = vadd.f32 %v1090, %v1330
        %v1332 = vpop.f32.mrb[0].mxu0
        %1333 = vmatprep.mubr.bf16.mxu0 %v644
        %1334 = vmatmul.mubr.bf16.gmra.mrb[0].mxu0 %v643
        %v1335 = vpop.f32.mrb[0].mxu0
        %v1336 = vadd.f32 %v1095, %v1335
        %v1337 = vpop.f32.mrb[0].mxu0
        %v1338 = vpop.f32.mrb[0].mxu0
        %v1339 = vadd.f32 %v1098, %v1338
        %v1340 = vpop.f32.mrb[0].mxu0
        %1341 = vmatprep.mubr.bf16.mxu0 %v647
        %1342 = vmatmul.mubr.bf16.gmra.mrb[0].mxu0 %v646
        %v1343 = vpop.f32.mrb[0].mxu0
        %v1344 = vadd.f32 %v1103, %v1343
        %v1345 = vpop.f32.mrb[0].mxu0
        %v1346 = vpop.f32.mrb[0].mxu0
        %v1347 = vadd.f32 %v1106, %v1346
        %v1348 = vpop.f32.mrb[0].mxu0
        %1349 = vdwg.mxu0
        %1350 = vmatprep.subr.bf16.mxu0 0
        %1351 = vmatpush1.bf16.msra.mxu0 %v1221
        %1352 = vmatprep.subr.bf16.mxu0 0
        %1353 = vmatpush1.bf16.msra.mxu0 %v1222
        %1354 = vmatprep.subr.bf16.mxu0 0
        %1355 = vmatpush1.bf16.msra.mxu0 %v1223
        %1356 = vmatprep.subr.bf16.mxu0 0
        %1357 = vmatpush1.bf16.msra.mxu0 %v1224
        %1358 = vmatprep.subr.bf16.mxu0 0
        %1359 = vmatpush1.bf16.msra.mxu0 %v1225
        %1360 = vmatprep.subr.bf16.mxu0 0
        %1361 = vmatpush1.bf16.msra.mxu0 %v1226
        %1362 = vmatprep.subr.bf16.mxu0 0
        %1363 = vmatpush1.bf16.msra.mxu0 %v1227
        %1364 = vmatprep.subr.bf16.mxu0 0
        %1365 = vmatpush1.bf16.msra.mxu0 %v1228
        %1366 = vmatprep.subr.bf16.mxu0 0
        %1367 = vmatpush1.bf16.msra.mxu0 0
        %1368 = vmatprep.subr.bf16.mxu0 0
        %1369 = vmatpush1.bf16.msra.mxu0 0
        %1370 = vmatprep.subr.bf16.mxu0 0
        %1371 = vmatpush1.bf16.msra.mxu0 0
        %1372 = vmatprep.subr.bf16.mxu0 0
        %1373 = vmatpush1.bf16.msra.mxu0 0
        %1374 = vmatprep.subr.bf16.mxu0 0
        %1375 = vmatpush1.bf16.msra.mxu0 0
        %1376 = vmatprep.subr.bf16.mxu0 0
        %1377 = vmatpush1.bf16.msra.mxu0 0
        %1378 = vmatprep.subr.bf16.mxu0 0
        %1379 = vmatpush1.bf16.msra.mxu0 0
        %1380 = vmatprep.subr.bf16.mxu0 0
        %1381 = vmatpush1.bf16.msra.mxu0 0
        %1382 = vmatprep.mubr.bf16.mxu0 0
        %1383 = vmatmul.mubr.bf16.gmra.mrb[0].mxu0 %v627
        %v1384 = vpop.f32.mrb[0].mxu0
        %v1385 = vadd.f32 %v1288, %v1384
        %v1386 = vpop.f32.mrb[0].mxu0
        %v1387 = vpop.f32.mrb[0].mxu0
        %v1388 = vadd.f32 %v1291, %v1387
        %v1389 = vpop.f32.mrb[0].mxu0
        %1390 = vmatprep.mubr.bf16.mxu0 0
        %1391 = vmatmul.mubr.bf16.gmra.mrb[0].mxu0 %v630
        %v1392 = vpop.f32.mrb[0].mxu0
        %v1393 = vadd.f32 %v1296, %v1392
        %v1394 = vpop.f32.mrb[0].mxu0
        %v1395 = vpop.f32.mrb[0].mxu0
        %v1396 = vadd.f32 %v1299, %v1395
        %v1397 = vpop.f32.mrb[0].mxu0
        %1398 = vmatprep.mubr.bf16.mxu0 0
        %1399 = vmatmul.mubr.bf16.gmra.mrb[0].mxu0 %v633
        %v1400 = vpop.f32.mrb[0].mxu0
        %v1401 = vadd.f32 %v1304, %v1400
        %v1402 = vpop.f32.mrb[0].mxu0
        %v1403 = vpop.f32.mrb[0].mxu0
        %v1404 = vadd.f32 %v1307, %v1403
        %v1405 = vpop.f32.mrb[0].mxu0
        %1406 = vmatprep.mubr.bf16.mxu0 0
        %1407 = vmatmul.mubr.bf16.gmra.mrb[0].mxu0 %v636
        %v1408 = vpop.f32.mrb[0].mxu0
        %v1409 = vadd.f32 %v1312, %v1408
        %v1410 = vpop.f32.mrb[0].mxu0
        %v1411 = vpop.f32.mrb[0].mxu0
        %v1412 = vadd.f32 %v1315, %v1411
        %v1413 = vpop.f32.mrb[0].mxu0
        %1414 = vmatprep.mubr.bf16.mxu0 0
        %1415 = vmatmul.mubr.bf16.gmra.mrb[0].mxu0 %v639
        %v1416 = vpop.f32.mrb[0].mxu0
        %v1417 = vadd.f32 %v1320, %v1416
        %v1418 = vpop.f32.mrb[0].mxu0
        %v1419 = vpop.f32.mrb[0].mxu0
        %v1420 = vadd.f32 %v1323, %v1419
        %v1421 = vpop.f32.mrb[0].mxu0
        %1422 = vmatprep.mubr.bf16.mxu0 0
        %1423 = vmatmul.mubr.bf16.gmra.mrb[0].mxu0 %v642
        %v1424 = vpop.f32.mrb[0].mxu0
        %v1425 = vadd.f32 %v1328, %v1424
        %v1426 = vpop.f32.mrb[0].mxu0
        %v1427 = vpop.f32.mrb[0].mxu0
        %v1428 = vadd.f32 %v1331, %v1427
        %v1429 = vpop.f32.mrb[0].mxu0
        %1430 = vmatprep.mubr.bf16.mxu0 0
        %1431 = vmatmul.mubr.bf16.gmra.mrb[0].mxu0 %v645
        %v1432 = vpop.f32.mrb[0].mxu0
        %v1433 = vadd.f32 %v1336, %v1432
        %v1434 = vpop.f32.mrb[0].mxu0
        %v1435 = vpop.f32.mrb[0].mxu0
        %v1436 = vadd.f32 %v1339, %v1435
        %v1437 = vpop.f32.mrb[0].mxu0
        %1438 = vmatprep.mubr.bf16.mxu0 0
        %1439 = vmatmul.mubr.bf16.gmra.mrb[0].mxu0 %v648
        %v1440 = vpop.f32.mrb[0].mxu0
        %v1441 = vadd.f32 %v1344, %v1440
        %v1442 = vpop.f32.mrb[0].mxu0
        %v1443 = vpop.f32.mrb[0].mxu0
        %v1444 = vadd.f32 %v1347, %v1443
        %v1445 = vpop.f32.mrb[0].mxu0
        %1446 = vdwg.mxu0
        %s1447 = scalar_lea.vmem [#allocation3], 48
        %v1448 = vld [vmem:[%s1447] sm:$0xff]
        %v1449 = vld [vmem:[%s1447 + $0x8] sm:$0xff]
        %v1450 = vld [vmem:[%s1447 + $0x10] sm:$0xff]
        %v1451 = vld [vmem:[%s1447 + $0x18] sm:$0xff]
        %v1452 = vld [vmem:[%s1447 + $0x20] sm:$0xff]
        %v1453 = vld [vmem:[%s1447 + $0x28] sm:$0xff]
        %v1454 = vld [vmem:[%s1447 + $0x30] sm:$0xff]
        %v1455 = vld [vmem:[%s1447 + $0x38] sm:$0xff]
        %v1456 = vld [vmem:[%s1447 + $0x40] sm:$0xff]
        %v1457 = vld [vmem:[%s1447 + $0x48] sm:$0xff]
        %v1458 = vld [vmem:[%s1447 + $0x50] sm:$0xff]
        %v1459 = vld [vmem:[%s1447 + $0x58] sm:$0xff]
        %v1460 = vld [vmem:[%s1447 + $0x60] sm:$0xff]
        %v1461 = vld [vmem:[%s1447 + $0x68] sm:$0xff]
        %v1462 = vld [vmem:[%s1447 + $0x70] sm:$0xff]
        %v1463 = vld [vmem:[%s1447 + $0x78] sm:$0xff]
        %v1464 = vld [vmem:[%s1447 + $0x80] sm:$0xff]
        %v1465 = vld [vmem:[%s1447 + $0x88] sm:$0xff]
        %v1466 = vld [vmem:[%s1447 + $0x90] sm:$0xff]
        %v1467 = vld [vmem:[%s1447 + $0x98] sm:$0xff]
        %v1468 = vld [vmem:[%s1447 + $0xa0] sm:$0xff]
        %v1469 = vld [vmem:[%s1447 + $0xa8] sm:$0xff]
        %v1470 = vld [vmem:[%s1447 + $0xb0] sm:$0xff]
        %v1471 = vld [vmem:[%s1447 + $0xb8] sm:$0xff]
        %s1472 = scalar_lea.vmem [#allocation5], 384
        %v1473 = vld [vmem:[%s1472] sm:$0xf]
        %v1474 = vld [vmem:[%s1472 + $0x4] sm:$0xf]
        %v1475 = vld [vmem:[%s1472 + $0x8] sm:$0xf]
        %v1476 = vld [vmem:[%s1472 + $0xc] sm:$0xf]
        %v1477 = vld [vmem:[%s1472 + $0x10] sm:$0xf]
        %v1478 = vld [vmem:[%s1472 + $0x14] sm:$0xf]
        %v1479 = vld [vmem:[%s1472 + $0x18] sm:$0xf]
        %v1480 = vld [vmem:[%s1472 + $0x1c] sm:$0xf]
        %v1481 = vld [vmem:[%s1472 + $0x20] sm:$0xf]
        %v1482 = vld [vmem:[%s1472 + $0x24] sm:$0xf]
        %v1483 = vld [vmem:[%s1472 + $0x28] sm:$0xf]
        %v1484 = vld [vmem:[%s1472 + $0x2c] sm:$0xf]
        %v1485 = vld [vmem:[%s1472 + $0x30] sm:$0xf]
        %v1486 = vld [vmem:[%s1472 + $0x34] sm:$0xf]
        %v1487 = vld [vmem:[%s1472 + $0x38] sm:$0xf]
        %v1488 = vld [vmem:[%s1472 + $0x3c] sm:$0xf]
        %v1489 = vld [vmem:[%s1472 + $0x40] sm:$0xf]
        %v1490 = vld [vmem:[%s1472 + $0x44] sm:$0xf]
        %v1491 = vld [vmem:[%s1472 + $0x48] sm:$0xf]
        %v1492 = vld [vmem:[%s1472 + $0x4c] sm:$0xf]
        %v1493 = vld [vmem:[%s1472 + $0x50] sm:$0xf]
        %v1494 = vld [vmem:[%s1472 + $0x54] sm:$0xf]
        %v1495 = vld [vmem:[%s1472 + $0x58] sm:$0xf]
        %v1496 = vld [vmem:[%s1472 + $0x5c] sm:$0xf]
        %v1497 = vld [vmem:[%s1472 + $0x60] sm:$0xf]
        %v1498 = vld [vmem:[%s1472 + $0x64] sm:$0xf]
        %v1499 = vld [vmem:[%s1472 + $0x68] sm:$0xf]
        %v1500 = vld [vmem:[%s1472 + $0x6c] sm:$0xf]
        %v1501 = vld [vmem:[%s1472 + $0x70] sm:$0xf]
        %v1502 = vld [vmem:[%s1472 + $0x74] sm:$0xf]
        %v1503 = vld [vmem:[%s1472 + $0x78] sm:$0xf]
        %v1504 = vld [vmem:[%s1472 + $0x7c] sm:$0xf]
        %v1505 = vld [vmem:[%s1472 + $0x80] sm:$0xf]
        %v1506 = vld [vmem:[%s1472 + $0x84] sm:$0xf]
        %v1507 = vld [vmem:[%s1472 + $0x88] sm:$0xf]
        %v1508 = vld [vmem:[%s1472 + $0x8c] sm:$0xf]
        %v1509 = vld [vmem:[%s1472 + $0x90] sm:$0xf]
        %v1510 = vld [vmem:[%s1472 + $0x94] sm:$0xf]
        %v1511 = vld [vmem:[%s1472 + $0x98] sm:$0xf]
        %v1512 = vld [vmem:[%s1472 + $0x9c] sm:$0xf]
        %v1513 = vld [vmem:[%s1472 + $0xa0] sm:$0xf]
        %v1514 = vld [vmem:[%s1472 + $0xa4] sm:$0xf]
        %v1515 = vld [vmem:[%s1472 + $0xa8] sm:$0xf]
        %v1516 = vld [vmem:[%s1472 + $0xac] sm:$0xf]
        %v1517 = vld [vmem:[%s1472 + $0xb0] sm:$0xf]
        %v1518 = vld [vmem:[%s1472 + $0xb4] sm:$0xf]
        %v1519 = vld [vmem:[%s1472 + $0xb8] sm:$0xf]
        %v1520 = vld [vmem:[%s1472 + $0xbc] sm:$0xf]
        %v1569 = vunpack.c.l.b16 %v1473
        %v1570 = vunpack.c.l.b16 %v1474
        %v1571 = vunpack.c.l.b16 %v1475
        %v1572 = vunpack.c.l.b16 %v1476
        %v1573 = vunpack.c.l.b16 %v1477
        %v1574 = vunpack.c.l.b16 %v1478
        %v1575 = vunpack.c.l.b16 %v1479
        %v1576 = vunpack.c.l.b16 %v1480
        %v1577 = vunpack.c.l.b16 %v1481
        %v1578 = vunpack.c.l.b16 %v1482
        %v1579 = vunpack.c.l.b16 %v1483
        %v1580 = vunpack.c.l.b16 %v1484
        %v1581 = vunpack.c.l.b16 %v1485
        %v1582 = vunpack.c.l.b16 %v1486
        %v1583 = vunpack.c.l.b16 %v1487
        %v1584 = vunpack.c.l.b16 %v1488
        %v1585 = vunpack.c.l.b16 %v1489
        %v1586 = vunpack.c.l.b16 %v1490
        %v1587 = vunpack.c.l.b16 %v1491
        %v1588 = vunpack.c.l.b16 %v1492
        %v1589 = vunpack.c.l.b16 %v1493
        %v1590 = vunpack.c.l.b16 %v1494
        %v1591 = vunpack.c.l.b16 %v1495
        %v1592 = vunpack.c.l.b16 %v1496
        %v1593 = vunpack.c.l.b16 %v1497
        %v1594 = vunpack.c.l.b16 %v1498
        %v1595 = vunpack.c.l.b16 %v1499
        %v1596 = vunpack.c.l.b16 %v1500
        %v1597 = vunpack.c.l.b16 %v1501
        %v1598 = vunpack.c.l.b16 %v1502
        %v1599 = vunpack.c.l.b16 %v1503
        %v1600 = vunpack.c.l.b16 %v1504
        %v1601 = vunpack.c.l.b16 %v1505
        %v1602 = vunpack.c.l.b16 %v1506
        %v1603 = vunpack.c.l.b16 %v1507
        %v1604 = vunpack.c.l.b16 %v1508
        %v1605 = vunpack.c.l.b16 %v1509
        %v1606 = vunpack.c.l.b16 %v1510
        %v1607 = vunpack.c.l.b16 %v1511
        %v1608 = vunpack.c.l.b16 %v1512
        %v1609 = vunpack.c.l.b16 %v1513
        %v1610 = vunpack.c.l.b16 %v1514
        %v1611 = vunpack.c.l.b16 %v1515
        %v1612 = vunpack.c.l.b16 %v1516
        %v1613 = vunpack.c.l.b16 %v1517
        %v1614 = vunpack.c.l.b16 %v1518
        %v1615 = vunpack.c.l.b16 %v1519
        %v1616 = vunpack.c.l.b16 %v1520
        %v1617 = vpack.c.b16 %v1570, %v1569
        %v1618 = vpack.c.b16 %v1572, %v1571
        %v1619 = vpack.c.b16 %v1574, %v1573
        %v1620 = vpack.c.b16 %v1576, %v1575
        %v1621 = vpack.c.b16 %v1578, %v1577
        %v1622 = vpack.c.b16 %v1580, %v1579
        %v1623 = vpack.c.b16 %v1582, %v1581
        %v1624 = vpack.c.b16 %v1584, %v1583
        %v1625 = vpack.c.b16 %v1586, %v1585
        %v1626 = vpack.c.b16 %v1588, %v1587
        %v1627 = vpack.c.b16 %v1590, %v1589
        %v1628 = vpack.c.b16 %v1592, %v1591
        %v1629 = vpack.c.b16 %v1594, %v1593
        %v1630 = vpack.c.b16 %v1596, %v1595
        %v1631 = vpack.c.b16 %v1598, %v1597
        %v1632 = vpack.c.b16 %v1600, %v1599
        %v1633 = vpack.c.b16 %v1602, %v1601
        %v1634 = vpack.c.b16 %v1604, %v1603
        %v1635 = vpack.c.b16 %v1606, %v1605
        %v1636 = vpack.c.b16 %v1608, %v1607
        %v1637 = vpack.c.b16 %v1610, %v1609
        %v1638 = vpack.c.b16 %v1612, %v1611
        %v1639 = vpack.c.b16 %v1614, %v1613
        %v1640 = vpack.c.b16 %v1616, %v1615
        %1665 = vmatprep.subr.bf16.mxu0 0
        %1666 = vmatpush1.bf16.msra.mxu0 %v1617
        %1667 = vmatprep.subr.bf16.mxu0 0
        %1668 = vmatpush1.bf16.msra.mxu0 %v1618
        %1669 = vmatprep.subr.bf16.mxu0 0
        %1670 = vmatpush1.bf16.msra.mxu0 %v1619
        %1671 = vmatprep.subr.bf16.mxu0 0
        %1672 = vmatpush1.bf16.msra.mxu0 %v1620
        %1673 = vmatprep.subr.bf16.mxu0 0
        %1674 = vmatpush1.bf16.msra.mxu0 %v1621
        %1675 = vmatprep.subr.bf16.mxu0 0
        %1676 = vmatpush1.bf16.msra.mxu0 %v1622
        %1677 = vmatprep.subr.bf16.mxu0 0
        %1678 = vmatpush1.bf16.msra.mxu0 %v1623
        %1679 = vmatprep.subr.bf16.mxu0 0
        %1680 = vmatpush1.bf16.msra.mxu0 %v1624
        %1681 = vmatprep.subr.bf16.mxu0 0
        %1682 = vmatpush1.bf16.msra.mxu0 %v1625
        %1683 = vmatprep.subr.bf16.mxu0 0
        %1684 = vmatpush1.bf16.msra.mxu0 %v1626
        %1685 = vmatprep.subr.bf16.mxu0 0
        %1686 = vmatpush1.bf16.msra.mxu0 %v1627
        %1687 = vmatprep.subr.bf16.mxu0 0
        %1688 = vmatpush1.bf16.msra.mxu0 %v1628
        %1689 = vmatprep.subr.bf16.mxu0 0
        %1690 = vmatpush1.bf16.msra.mxu0 %v1629
        %1691 = vmatprep.subr.bf16.mxu0 0
        %1692 = vmatpush1.bf16.msra.mxu0 %v1630
        %1693 = vmatprep.subr.bf16.mxu0 0
        %1694 = vmatpush1.bf16.msra.mxu0 %v1631
        %1695 = vmatprep.subr.bf16.mxu0 0
        %1696 = vmatpush1.bf16.msra.mxu0 %v1632
        %1697 = vmatprep.mubr.bf16.mxu0 %v1449
        %1698 = vmatmul.mubr.bf16.gmra.mrb[0].mxu0 %v1448
        %v1699 = vpop.f32.mrb[0].mxu0
        %v1700 = vadd.f32 0.0, %v1699
        %v1701 = vpop.f32.mrb[0].mxu0
        %v1702 = vpop.f32.mrb[0].mxu0
        %v1703 = vadd.f32 0.0, %v1702
        %v1704 = vpop.f32.mrb[0].mxu0
        %1705 = vmatprep.mubr.bf16.mxu0 %v1452
        %1706 = vmatmul.mubr.bf16.gmra.mrb[0].mxu0 %v1451
        %v1707 = vpop.f32.mrb[0].mxu0
        %v1708 = vadd.f32 0.0, %v1707
        %v1709 = vpop.f32.mrb[0].mxu0
        %v1710 = vpop.f32.mrb[0].mxu0
        %v1711 = vadd.f32 0.0, %v1710
        %v1712 = vpop.f32.mrb[0].mxu0
        %1713 = vmatprep.mubr.bf16.mxu0 %v1455
        %1714 = vmatmul.mubr.bf16.gmra.mrb[0].mxu0 %v1454
        %v1715 = vpop.f32.mrb[0].mxu0
        %v1716 = vadd.f32 0.0, %v1715
        %v1717 = vpop.f32.mrb[0].mxu0
        %v1718 = vpop.f32.mrb[0].mxu0
        %v1719 = vadd.f32 0.0, %v1718
        %v1720 = vpop.f32.mrb[0].mxu0
        %1721 = vmatprep.mubr.bf16.mxu0 %v1458
        %1722 = vmatmul.mubr.bf16.gmra.mrb[0].mxu0 %v1457
        %v1723 = vpop.f32.mrb[0].mxu0
        %v1724 = vadd.f32 0.0, %v1723
        %v1725 = vpop.f32.mrb[0].mxu0
        %v1726 = vpop.f32.mrb[0].mxu0
        %v1727 = vadd.f32 0.0, %v1726
        %v1728 = vpop.f32.mrb[0].mxu0
        %1729 = vmatprep.mubr.bf16.mxu0 %v1461
        %1730 = vmatmul.mubr.bf16.gmra.mrb[0].mxu0 %v1460
        %v1731 = vpop.f32.mrb[0].mxu0
        %v1732 = vadd.f32 0.0, %v1731
        %v1733 = vpop.f32.mrb[0].mxu0
        %v1734 = vpop.f32.mrb[0].mxu0
        %v1735 = vadd.f32 0.0, %v1734
        %v1736 = vpop.f32.mrb[0].mxu0
        %1737 = vmatprep.mubr.bf16.mxu0 %v1464
        %1738 = vmatmul.mubr.bf16.gmra.mrb[0].mxu0 %v1463
        %v1739 = vpop.f32.mrb[0].mxu0
        %v1740 = vadd.f32 0.0, %v1739
        %v1741 = vpop.f32.mrb[0].mxu0
        %v1742 = vpop.f32.mrb[0].mxu0
        %v1743 = vadd.f32 0.0, %v1742
        %v1744 = vpop.f32.mrb[0].mxu0
        %1745 = vmatprep.mubr.bf16.mxu0 %v1467
        %1746 = vmatmul.mubr.bf16.gmra.mrb[0].mxu0 %v1466
        %v1747 = vpop.f32.mrb[0].mxu0
        %v1748 = vadd.f32 0.0, %v1747
        %v1749 = vpop.f32.mrb[0].mxu0
        %v1750 = vpop.f32.mrb[0].mxu0
        %v1751 = vadd.f32 0.0, %v1750
        %v1752 = vpop.f32.mrb[0].mxu0
        %1753 = vmatprep.mubr.bf16.mxu0 %v1470
        %1754 = vmatmul.mubr.bf16.gmra.mrb[0].mxu0 %v1469
        %v1755 = vpop.f32.mrb[0].mxu0
        %v1756 = vadd.f32 0.0, %v1755
        %v1757 = vpop.f32.mrb[0].mxu0
        %v1758 = vpop.f32.mrb[0].mxu0
        %v1759 = vadd.f32 0.0, %v1758
        %v1760 = vpop.f32.mrb[0].mxu0
        %1761 = vdwg.mxu0
        %1762 = vmatprep.subr.bf16.mxu0 0
        %1763 = vmatpush1.bf16.msra.mxu0 %v1633
        %1764 = vmatprep.subr.bf16.mxu0 0
        %1765 = vmatpush1.bf16.msra.mxu0 %v1634
        %1766 = vmatprep.subr.bf16.mxu0 0
        %1767 = vmatpush1.bf16.msra.mxu0 %v1635
        %1768 = vmatprep.subr.bf16.mxu0 0
        %1769 = vmatpush1.bf16.msra.mxu0 %v1636
        %1770 = vmatprep.subr.bf16.mxu0 0
        %1771 = vmatpush1.bf16.msra.mxu0 %v1637
        %1772 = vmatprep.subr.bf16.mxu0 0
        %1773 = vmatpush1.bf16.msra.mxu0 %v1638
        %1774 = vmatprep.subr.bf16.mxu0 0
        %1775 = vmatpush1.bf16.msra.mxu0 %v1639
        %1776 = vmatprep.subr.bf16.mxu0 0
        %1777 = vmatpush1.bf16.msra.mxu0 %v1640
        %1778 = vmatprep.subr.bf16.mxu0 0
        %1779 = vmatpush1.bf16.msra.mxu0 0
        %1780 = vmatprep.subr.bf16.mxu0 0
        %1781 = vmatpush1.bf16.msra.mxu0 0
        %1782 = vmatprep.subr.bf16.mxu0 0
        %1783 = vmatpush1.bf16.msra.mxu0 0
        %1784 = vmatprep.subr.bf16.mxu0 0
        %1785 = vmatpush1.bf16.msra.mxu0 0
        %1786 = vmatprep.subr.bf16.mxu0 0
        %1787 = vmatpush1.bf16.msra.mxu0 0
        %1788 = vmatprep.subr.bf16.mxu0 0
        %1789 = vmatpush1.bf16.msra.mxu0 0
        %1790 = vmatprep.subr.bf16.mxu0 0
        %1791 = vmatpush1.bf16.msra.mxu0 0
        %1792 = vmatprep.subr.bf16.mxu0 0
        %1793 = vmatpush1.bf16.msra.mxu0 0
        %1794 = vmatprep.mubr.bf16.mxu0 0
        %1795 = vmatmul.mubr.bf16.gmra.mrb[0].mxu0 %v1450
        %v1796 = vpop.f32.mrb[0].mxu0
        %v1797 = vadd.f32 %v1700, %v1796
        %v1798 = vpop.f32.mrb[0].mxu0
        %v1799 = vpop.f32.mrb[0].mxu0
        %v1800 = vadd.f32 %v1703, %v1799
        %v1801 = vpop.f32.mrb[0].mxu0
        %1802 = vmatprep.mubr.bf16.mxu0 0
        %1803 = vmatmul.mubr.bf16.gmra.mrb[0].mxu0 %v1453
        %v1804 = vpop.f32.mrb[0].mxu0
        %v1805 = vadd.f32 %v1708, %v1804
        %v1806 = vpop.f32.mrb[0].mxu0
        %v1807 = vpop.f32.mrb[0].mxu0
        %v1808 = vadd.f32 %v1711, %v1807
        %v1809 = vpop.f32.mrb[0].mxu0
        %1810 = vmatprep.mubr.bf16.mxu0 0
        %1811 = vmatmul.mubr.bf16.gmra.mrb[0].mxu0 %v1456
        %v1812 = vpop.f32.mrb[0].mxu0
        %v1813 = vadd.f32 %v1716, %v1812
        %v1814 = vpop.f32.mrb[0].mxu0
        %v1815 = vpop.f32.mrb[0].mxu0
        %v1816 = vadd.f32 %v1719, %v1815
        %v1817 = vpop.f32.mrb[0].mxu0
        %1818 = vmatprep.mubr.bf16.mxu0 0
        %1819 = vmatmul.mubr.bf16.gmra.mrb[0].mxu0 %v1459
        %v1820 = vpop.f32.mrb[0].mxu0
        %v1821 = vadd.f32 %v1724, %v1820
        %v1822 = vpop.f32.mrb[0].mxu0
        %v1823 = vpop.f32.mrb[0].mxu0
        %v1824 = vadd.f32 %v1727, %v1823
        %v1825 = vpop.f32.mrb[0].mxu0
        %1826 = vmatprep.mubr.bf16.mxu0 0
        %1827 = vmatmul.mubr.bf16.gmra.mrb[0].mxu0 %v1462
        %v1828 = vpop.f32.mrb[0].mxu0
        %v1829 = vadd.f32 %v1732, %v1828
        %v1830 = vpop.f32.mrb[0].mxu0
        %v1831 = vpop.f32.mrb[0].mxu0
        %v1832 = vadd.f32 %v1735, %v1831
        %v1833 = vpop.f32.mrb[0].mxu0
        %1834 = vmatprep.mubr.bf16.mxu0 0
        %1835 = vmatmul.mubr.bf16.gmra.mrb[0].mxu0 %v1465
        %v1836 = vpop.f32.mrb[0].mxu0
        %v1837 = vadd.f32 %v1740, %v1836
        %v1838 = vpop.f32.mrb[0].mxu0
        %v1839 = vpop.f32.mrb[0].mxu0
        %v1840 = vadd.f32 %v1743, %v1839
        %v1841 = vpop.f32.mrb[0].mxu0
        %1842 = vmatprep.mubr.bf16.mxu0 0
        %1843 = vmatmul.mubr.bf16.gmra.mrb[0].mxu0 %v1468
        %v1844 = vpop.f32.mrb[0].mxu0
        %v1845 = vadd.f32 %v1748, %v1844
        %v1846 = vpop.f32.mrb[0].mxu0
        %v1847 = vpop.f32.mrb[0].mxu0
        %v1848 = vadd.f32 %v1751, %v1847
        %v1849 = vpop.f32.mrb[0].mxu0
        %1850 = vmatprep.mubr.bf16.mxu0 0
        %1851 = vmatmul.mubr.bf16.gmra.mrb[0].mxu0 %v1471
        %v1852 = vpop.f32.mrb[0].mxu0
        %v1853 = vadd.f32 %v1756, %v1852
        %v1854 = vpop.f32.mrb[0].mxu0
        %v1855 = vpop.f32.mrb[0].mxu0
        %v1856 = vadd.f32 %v1759, %v1855
        %v1857 = vpop.f32.mrb[0].mxu0
        %1858 = vdwg.mxu0
        %v1859 = vadd.f32 %v1385, %v1797
        %v1860 = vadd.f32 %v1388, %v1800
        %v1861 = vadd.f32 %v1393, %v1805
        %v1862 = vadd.f32 %v1396, %v1808
        %v1863 = vadd.f32 %v1401, %v1813
        %v1864 = vadd.f32 %v1404, %v1816
        %v1865 = vadd.f32 %v1409, %v1821
        %v1866 = vadd.f32 %v1412, %v1824
        %v1867 = vadd.f32 %v1417, %v1829
        %v1868 = vadd.f32 %v1420, %v1832
        %v1869 = vadd.f32 %v1425, %v1837
        %v1870 = vadd.f32 %v1428, %v1840
        %v1871 = vadd.f32 %v1433, %v1845
        %v1872 = vadd.f32 %v1436, %v1848
        %v1873 = vadd.f32 %v1441, %v1853
        %v1874 = vadd.f32 %v1444, %v1856
        %v1875 = vld [vmem:[%s2] sm:$0x1]
        %v1877 = vlaneseq
        %v1878 = vshrl.u32 %v1877, 7
        %v1879 = vsub.s32 0, %v1878
        %v1880 = vrot.slane %v1875, %v1879
        %v1882 = vadd.f32 %v1859, %v1880
        %v1883 = vadd.f32 %v1860, %v1880
        %v1884 = vadd.f32 %v1861, %v1880
        %v1885 = vadd.f32 %v1862, %v1880
        %v1886 = vadd.f32 %v1863, %v1880
        %v1887 = vadd.f32 %v1864, %v1880
        %v1888 = vadd.f32 %v1865, %v1880
        %v1889 = vadd.f32 %v1866, %v1880
        %v1890 = vadd.f32 %v1867, %v1880
        %v1891 = vadd.f32 %v1868, %v1880
        %v1892 = vadd.f32 %v1869, %v1880
        %v1893 = vadd.f32 %v1870, %v1880
        %v1894 = vadd.f32 %v1871, %v1880
        %v1895 = vadd.f32 %v1872, %v1880
        %v1896 = vadd.f32 %v1873, %v1880
        %v1897 = vadd.f32 %v1874, %v1880
        %vm1898 = vcmp.gt.f32.partialorder %v1882, 0.0
        %vm1899 = vcmp.gt.f32.partialorder %v1883, 0.0
        %vm1900 = vcmp.gt.f32.partialorder %v1884, 0.0
        %vm1901 = vcmp.gt.f32.partialorder %v1885, 0.0
        %vm1902 = vcmp.gt.f32.partialorder %v1886, 0.0
        %vm1903 = vcmp.gt.f32.partialorder %v1887, 0.0
        %vm1904 = vcmp.gt.f32.partialorder %v1888, 0.0
        %vm1905 = vcmp.gt.f32.partialorder %v1889, 0.0
        %vm1906 = vcmp.gt.f32.partialorder %v1890, 0.0
        %vm1907 = vcmp.gt.f32.partialorder %v1891, 0.0
        %vm1908 = vcmp.gt.f32.partialorder %v1892, 0.0
        %vm1909 = vcmp.gt.f32.partialorder %v1893, 0.0
        %vm1910 = vcmp.gt.f32.partialorder %v1894, 0.0
        %vm1911 = vcmp.gt.f32.partialorder %v1895, 0.0
        %vm1912 = vcmp.gt.f32.partialorder %v1896, 0.0
        %vm1913 = vcmp.gt.f32.partialorder %v1897, 0.0
        %v1914 = vmul.f32 %v1882, 0.2
        %v1915 = vmul.f32 %v1883, 0.2
        %v1916 = vmul.f32 %v1884, 0.2
        %v1917 = vmul.f32 %v1885, 0.2
        %v1918 = vmul.f32 %v1886, 0.2
        %v1919 = vmul.f32 %v1887, 0.2
        %v1920 = vmul.f32 %v1888, 0.2
        %v1921 = vmul.f32 %v1889, 0.2
        %v1922 = vmul.f32 %v1890, 0.2
        %v1923 = vmul.f32 %v1891, 0.2
        %v1924 = vmul.f32 %v1892, 0.2
        %v1925 = vmul.f32 %v1893, 0.2
        %v1926 = vmul.f32 %v1894, 0.2
        %v1927 = vmul.f32 %v1895, 0.2
        %v1928 = vmul.f32 %v1896, 0.2
        %v1929 = vmul.f32 %v1897, 0.2
        %v1930 = vsel %vm1898, %v1882, %v1914
        %v1931 = vsel %vm1899, %v1883, %v1915
        %v1932 = vsel %vm1900, %v1884, %v1916
        %v1933 = vsel %vm1901, %v1885, %v1917
        %v1934 = vsel %vm1902, %v1886, %v1918
        %v1935 = vsel %vm1903, %v1887, %v1919
        %v1936 = vsel %vm1904, %v1888, %v1920
        %v1937 = vsel %vm1905, %v1889, %v1921
        %v1938 = vsel %vm1906, %v1890, %v1922
        %v1939 = vsel %vm1907, %v1891, %v1923
        %v1940 = vsel %vm1908, %v1892, %v1924
        %v1941 = vsel %vm1909, %v1893, %v1925
        %v1942 = vsel %vm1910, %v1894, %v1926
        %v1943 = vsel %vm1911, %v1895, %v1927
        %v1944 = vsel %vm1912, %v1896, %v1928
        %v1945 = vsel %vm1913, %v1897, %v1929
        %v1946 = vunpack.c.l.bf16 %v350
        %v1947 = vunpack.c.h.bf16 %v350
        %v1948 = vunpack.c.l.bf16 %v351
        %v1949 = vunpack.c.h.bf16 %v351
        %v1950 = vunpack.c.l.bf16 %v352
        %v1951 = vunpack.c.h.bf16 %v352
        %v1952 = vunpack.c.l.bf16 %v353
        %v1953 = vunpack.c.h.bf16 %v353
        %v1954 = vunpack.c.l.bf16 %v354
        %v1955 = vunpack.c.h.bf16 %v354
        %v1956 = vunpack.c.l.bf16 %v355
        %v1957 = vunpack.c.h.bf16 %v355
        %v1958 = vunpack.c.l.bf16 %v356
        %v1959 = vunpack.c.h.bf16 %v356
        %v1960 = vunpack.c.l.bf16 %v357
        %v1961 = vunpack.c.h.bf16 %v357
        %v1962 = vadd.f32 %v1930, %v1946
        %v1963 = vadd.f32 %v1931, %v1947
        %v1964 = vadd.f32 %v1932, %v1948
        %v1965 = vadd.f32 %v1933, %v1949
        %v1966 = vadd.f32 %v1934, %v1950
        %v1967 = vadd.f32 %v1935, %v1951
        %v1968 = vadd.f32 %v1936, %v1952
        %v1969 = vadd.f32 %v1937, %v1953
        %v1970 = vadd.f32 %v1938, %v1954
        %v1971 = vadd.f32 %v1939, %v1955
        %v1972 = vadd.f32 %v1940, %v1956
        %v1973 = vadd.f32 %v1941, %v1957
        %v1974 = vadd.f32 %v1942, %v1958
        %v1975 = vadd.f32 %v1943, %v1959
        %v1976 = vadd.f32 %v1944, %v1960
        %v1977 = vadd.f32 %v1945, %v1961
        %v1978 = vmul.f32 %v1962, 0.70710677
        %v1979 = vmul.f32 %v1963, 0.70710677
        %v1980 = vmul.f32 %v1964, 0.70710677
        %v1981 = vmul.f32 %v1965, 0.70710677
        %v1982 = vmul.f32 %v1966, 0.70710677
        %v1983 = vmul.f32 %v1967, 0.70710677
        %v1984 = vmul.f32 %v1968, 0.70710677
        %v1985 = vmul.f32 %v1969, 0.70710677
        %v1986 = vmul.f32 %v1970, 0.70710677
        %v1987 = vmul.f32 %v1971, 0.70710677
        %v1988 = vmul.f32 %v1972, 0.70710677
        %v1989 = vmul.f32 %v1973, 0.70710677
        %v1990 = vmul.f32 %v1974, 0.70710677
        %v1991 = vmul.f32 %v1975, 0.70710677
        %v1992 = vmul.f32 %v1976, 0.70710677
        %v1993 = vmul.f32 %v1977, 0.70710677
        %1994 = vst [vmem:[%s162] sm:$0xff] %v1978
        %1995 = vst [vmem:[%s162 + $0x8] sm:$0xff] %v1979
        %1996 = vst [vmem:[%s162 + $0x10] sm:$0xff] %v1980
        %1997 = vst [vmem:[%s162 + $0x18] sm:$0xff] %v1981
        %1998 = vst [vmem:[%s162 + $0x20] sm:$0xff] %v1982
        %1999 = vst [vmem:[%s162 + $0x28] sm:$0xff] %v1983
        %2000 = vst [vmem:[%s162 + $0x30] sm:$0xff] %v1984
        %2001 = vst [vmem:[%s162 + $0x38] sm:$0xff] %v1985
        %2002 = vst [vmem:[%s162 + $0x40] sm:$0xff] %v1986
        %2003 = vst [vmem:[%s162 + $0x48] sm:$0xff] %v1987
        %2004 = vst [vmem:[%s162 + $0x50] sm:$0xff] %v1988
        %2005 = vst [vmem:[%s162 + $0x58] sm:$0xff] %v1989
        %2006 = vst [vmem:[%s162 + $0x60] sm:$0xff] %v1990
        %2007 = vst [vmem:[%s162 + $0x68] sm:$0xff] %v1991
        %2008 = vst [vmem:[%s162 + $0x70] sm:$0xff] %v1992
        %2009 = vst [vmem:[%s162 + $0x78] sm:$0xff] %v1993
        %s2010 = sand.u32 %s93, 1
        %s2011 = scalar_lea.sflag [#allocation7], %s2010
        %s2012 = sand.u32 %s93, 1
        %s2013 = smul.addr %s2012, 128
        %s2014 = scalar_lea.vmem [#allocation8], %s2013
        // Predicated region
        $region73: #{tpu_custom_call.1} parent=27 // pred_check
          %p2015 = pneg %p103
        $region74: #{tpu_custom_call.1} parent=27 // pred_check_branch
          %2017 = sbr.rel (%p2015) target = $region76
        $region75: #{tpu_custom_call.1} parent=27 // pred_region
          %s2018 = smul.u32 %s24, 2
          %s2019 = sadd.s32 %s2018, %s25
          %s2020 = smul.u32 8, %s2019
          %s2022 = ssub.s32 2048, 2048
          %2023 = vsyncadd %s2011, %s2022
          %s2024 = smul.addr %s2020, 2
          %s2025 = smul.addr %s23, 32
          %s2026 = sadd.s32 %s2024, %s2025
          %s2027 = smul.addr %s2026, 128
          %s2028 = scalar_lea.hbm %s3, %s2027
          %s2029 = sshll.u32 %s2014, 4
          %s2030 = int_to_ptr.vmem [resolvable:$true] %s2029
          %2035 = dma.vmem_to_hbm [thread:$0]  %s2030, 2048, %s2028, %s2011, 128, 128, 8
        $region76: #{tpu_custom_call.1} parent=27 // pred_fallthru
          _
      $region28: #{tpu_custom_call.1} parent=5 // pred_fallthru
        _
      %p2036 = scmp.le.s32.totalorder 2, %s13
      // Predicated region
      $region77: #{tpu_custom_call.1} parent=5 // pred_check
        %p2037 = pneg %p2036
      $region78: #{tpu_custom_call.1} parent=5 // pred_check_branch
        %2039 = sbr.rel (%p2037) target = $region80
      $region79: #{tpu_custom_call.1} parent=5 // pred_region
        %s2040 = ssub.s32 %s13, 2
        // Predicated region
        $region81: #{tpu_custom_call.1} parent=79 // pred_check
          %p2041 = pneg %p109
        $region82: #{tpu_custom_call.1} parent=79 // pred_check_branch
          %2043 = sbr.rel (%p2041) target = $region84
        $region83: #{tpu_custom_call.1} parent=79 // pred_region
          %s2044 = sand.u32 %s94, 1
          %s2045 = scalar_lea.sflag [#allocation7], %s2044
          %s2046 = sand.u32 %s94, 1
          %s2047 = smul.addr %s2046, 128
          %s2048 = scalar_lea.vmem [#allocation8], %s2047
          %2049 = dma.done %s2045, 2048
        $region84: #{tpu_custom_call.1} parent=79 // pred_fallthru
          _
      $region80: #{tpu_custom_call.1} parent=5 // pred_fallthru
        _
    $region6: #{tpu_custom_call.1} parent=1 // loop_footer
      %s17 = sadd.s32 1, %s13
    $region7: #{tpu_custom_call.1} parent=1 // loop_footer_branch
      %12 = sbr.rel target = $region3
    $region8: #{tpu_custom_call.1} parent=1 // loop_exit
      _
    %2050 = vsyncpa [#allocation6], 1
    %s2051 = scalar_lea.sflag [#allocation6], 1
    %2052 = vsyncpa %s2051, 1
    %2053 = vsyncpa [#allocation7], 1
    %s2054 = scalar_lea.sflag [#allocation7], 1
    %2055 = vsyncpa %s2054, 1
  %2056 = vsyncmov [#allocation4]
  %s2057 = vpop.sfrf %2056
  %p2058 = scmp.eq.s32.totalorder %s2057, 0
  %p2059 = pneg %p2058
  %2061 = shalt.err (%p2059)
  %s2062 = scalar_lea.sflag [#allocation4], 1
  %2063 = vsyncmov %s2062
  %s2064 = vpop.sfrf %2063
  %p2065 = scmp.eq.s32.totalorder %s2064, 0
  %p2066 = pneg %p2065
  %2068 = shalt.err (%p2066)
  %s2069 = scalar_lea.sflag [#allocation4], 2
  %2070 = vsyncmov %s2069
  %s2071 = vpop.sfrf %2070
  %p2072 = scmp.eq.s32.totalorder %s2071, 0
  %p2073 = pneg %p2072
  %2075 = shalt.err (%p2073)
  %s2076 = scalar_lea.sflag [#allocation4], 3
  %2077 = vsyncmov %s2076
  %s2078 = vpop.sfrf %2077
  %p2079 = scmp.eq.s32.totalorder %s2078, 0
  %p2080 = pneg %p2079
  %2082 = shalt.err (%p2080)
  %s2083 = scalar_lea.sflag [#allocation4], 4
  %2084 = vsyncmov %s2083
  %s2085 = vpop.sfrf %2084
  %p2086 = scmp.eq.s32.totalorder %s2085, 0
  %p2087 = pneg %p2086
  %2089 = shalt.err (%p2087)
  %s2090 = scalar_lea.sflag [#allocation4], 5
  %2091 = vsyncmov %s2090
  %s2092 = vpop.sfrf %2091
  %p2093 = scmp.eq.s32.totalorder %s2092, 0
  %p2094 = pneg %p2093
  %2096 = shalt.err (%p2094)

</llo_original>
